<compile_context>
chip_gen: v5e
topology: v5e:2x2
jax: 0.10.0
libtpu: 0.0.40
codegen_flags: <defaults>
</compile_context>

<pallas_src>
import jax
import jax.numpy as jnp
from jax import lax
from jax.experimental import pallas as pl
from jax.experimental.pallas import tpu as pltpu


def _pam_flash_kernel(xq_ref, xkv_ref, mqk_ref, kbias_ref, wv_ref, bv_ref,
                      gamma_ref, out_ref, g_scr, m_scr, l_scr, acc_scr):
    ki = pl.program_id(2)

    @pl.when(ki == 0)
    def _init():
        xq = xq_ref[0].astype(jnp.bfloat16)                           # (TQ, C)
        # Folded query factor: g_i = x_i @ (Wq Wk^T) + Wk @ bq
        g = lax.dot_general(xq, mqk_ref[...], (((1,), (0,)), ((), ())),
                            preferred_element_type=jnp.float32)       # (TQ, C)
        g_scr[...] = (g + kbias_ref[...]).astype(jnp.bfloat16)
        m_scr[...] = jnp.full(m_scr.shape, -jnp.inf, dtype=m_scr.dtype)
        l_scr[...] = jnp.zeros(l_scr.shape, dtype=l_scr.dtype)
        acc_scr[...] = jnp.zeros(acc_scr.shape, dtype=acc_scr.dtype)

    xkv = xkv_ref[0].astype(jnp.bfloat16)                             # (TK, C)

    # Energy tile: E[i, j] = g_i . x_j   (NT matmul, contraction depth C).
    e = lax.dot_general(g_scr[...], xkv, (((1,), (1,)), ((), ())),
                        preferred_element_type=jnp.float32)           # (TQ, TK)

    # Online softmax (f32 statistics).
    m_prev = m_scr[...]
    m_new = jnp.maximum(m_prev, jnp.max(e, axis=-1, keepdims=True))   # (TQ, 1)
    alpha = jnp.exp(m_prev - m_new)
    p = jnp.exp(e - m_new)                                            # (TQ, TK)
    l_scr[...] = alpha * l_scr[...] + jnp.sum(p, axis=-1, keepdims=True)
    m_scr[...] = m_new

    # Value projection of this KV tile (1x1 conv == channel matmul).
    v = lax.dot_general(xkv, wv_ref[...], (((1,), (0,)), ((), ())),
                        preferred_element_type=jnp.float32) + bv_ref[...]
    acc_scr[...] = alpha * acc_scr[...] + lax.dot_general(
        p.astype(jnp.bfloat16), v.astype(jnp.bfloat16),
        (((1,), (0,)), ((), ())), preferred_element_type=jnp.float32)

    @pl.when(ki == pl.num_programs(2) - 1)
    def _finalize():
        inv_l = pl.reciprocal(l_scr[...], approx=True)                # EUP vrcp
        attn_out = acc_scr[...] * inv_l                               # (TQ, C)
        out = gamma_ref[0, 0] * attn_out + xq_ref[0]
        out_ref[0] = out.astype(out_ref.dtype)


def _pick_tile(n, cap):
    """Largest divisor of n that is <= cap and a multiple of 8 (or n itself)."""
    t = min(n, cap)
    while t > 1:
        if n % t == 0 and (t % 8 == 0 or t == n):
            return t
        t -= 1
    return n


def pam_forward_bnc(x_bnc, wq, bq, wk, bk, wv, bv, gamma, *, tq=128, tk=128):
    """PAM forward on channels-last activations.  x_bnc: (B, N, C) float32."""
    del bk  # bk only shifts each softmax row by a constant -> no effect.
    B, N, C = x_bnc.shape
    tq = _pick_tile(N, tq)
    tk = _pick_tile(N, tk)
    nq, nk = N // tq, N // tk

    # Fold the query/key 1x1 convs:
    #   energy[i,j] = x_i (Wq Wk^T) x_j^T + x_j.(Wk bq) + (row-constant terms)
    mqk = (wq @ wk.T).astype(jnp.bfloat16)                   # (C, C)
    kbias = (wk @ bq).reshape(1, C).astype(jnp.float32)      # (1, C)
    wv_b = wv.astype(jnp.bfloat16)                           # (C, C)
    bv2 = bv.reshape(1, C).astype(jnp.float32)
    gamma2 = jnp.asarray(gamma, jnp.float32).reshape(1, 1)

    # VMEM budget (double-buffered inputs/outputs + scratch + e/p temporaries).
    est = 2 * 4 * (tq * C + tk * C + tq * C)        # xq, xkv, out (f32)
    est += 2 * 2 * (2 * C * C)                      # M, Wv (bf16)
    est += 2 * 2 * (4 * C)                          # kbias, bv
    est += tq * C * (2 + 4) + 2 * tq * 4            # g, acc, m, l scratch
    est += 4 * tq * tk * 4                          # e / p temporaries headroom
    vmem_limit = int(min(max(2 * est, 16 * 1024 * 1024), 64 * 1024 * 1024))

    flops = 2 * B * N * C * C                       # query factor x @ M
    flops += 2 * B * nq * N * C * C                 # value projection (per q tile)
    flops += 2 * B * N * N * C                      # energy
    flops += 2 * B * N * N * C                      # attn @ V
    transcendentals = B * N * N + B * nq * nk * tq
    bytes_accessed = 4 * B * N * C * (2 + nq) + 2 * 2 * C * C
    cost = pl.CostEstimate(flops=int(flops),
                           transcendentals=int(transcendentals),
                           bytes_accessed=int(bytes_accessed))

    out_bnc = pl.pallas_call(
        _pam_flash_kernel,
        out_shape=jax.ShapeDtypeStruct((B, N, C), x_bnc.dtype),
        grid=(B, nq, nk),
        in_specs=[
            pl.BlockSpec((1, tq, C), lambda b, qi, ki: (b, qi, 0)),   # x (query rows)
            pl.BlockSpec((1, tk, C), lambda b, qi, ki: (b, ki, 0)),   # x (key/value rows)
            pl.BlockSpec((C, C), lambda b, qi, ki: (0, 0)),           # M = Wq Wk^T (bf16)
            pl.BlockSpec((1, C), lambda b, qi, ki: (0, 0)),           # Wk @ bq
            pl.BlockSpec((C, C), lambda b, qi, ki: (0, 0)),           # Wv (bf16)
            pl.BlockSpec((1, C), lambda b, qi, ki: (0, 0)),           # bv
            pl.BlockSpec(memory_space=pltpu.MemorySpace.SMEM),        # gamma (scalar)
        ],
        out_specs=pl.BlockSpec((1, tq, C), lambda b, qi, ki: (b, qi, 0)),
        scratch_shapes=[
            pltpu.VMEM((tq, C), jnp.bfloat16),   # g: folded query factor
            pltpu.VMEM((tq, 1), jnp.float32),    # m: running max
            pltpu.VMEM((tq, 1), jnp.float32),    # l: running denominator
            pltpu.VMEM((tq, C), jnp.float32),    # acc: running numerator
        ],
        compiler_params=pltpu.CompilerParams(
            dimension_semantics=("parallel", "parallel", "arbitrary"),
            vmem_limit_bytes=vmem_limit),
        cost_estimate=cost,
    )(x_bnc, x_bnc, mqk, kbias, wv_b, bv2, gamma2)
    return out_bnc


def pam_forward(x_nchw, wq, bq, wk, bk, wv, bv, gamma, *, tq=128, tk=128):
    """PyTorch-compatible entry point.  x_nchw: (B, C, H, W) float32."""
    B, C, H, W = x_nchw.shape
    N = H * W
    # NCHW -> (B, N, C).  Callers that can keep activations channels-last
    # should use pam_forward_bnc directly and skip these two HBM transposes.
    x_bnc = jnp.transpose(x_nchw.reshape(B, C, N), (0, 2, 1))
    out_bnc = pam_forward_bnc(x_bnc, wq, bq, wk, bk, wv, bv, gamma, tq=tq, tk=tk)
    return jnp.transpose(out_bnc, (0, 2, 1)).reshape(B, C, H, W)


def pam_reference(x_nchw, wq, bq, wk, bk, wv, bv, gamma):
    """Pure-JAX reference matching the PyTorch PAM_Module forward exactly."""
    B, C, H, W = x_nchw.shape
    N = H * W
    x_bnc = jnp.transpose(x_nchw.reshape(B, C, N), (0, 2, 1))       # (B, N, C)
    q = jnp.einsum('bnc,cd->bnd', x_bnc, wq) + bq                   # (B, N, C8)
    k = jnp.einsum('bnc,cd->bnd', x_bnc, wk) + bk
    v = jnp.einsum('bnc,cd->bnd', x_bnc, wv) + bv                   # (B, N, C)
    energy = jnp.einsum('bid,bjd->bij', q, k)                       # (B, N, N)
    attn = jax.nn.softmax(energy, axis=-1)
    out = jnp.einsum('bij,bjc->bic', attn, v)                       # (B, N, C)
    out = gamma[0] * out + x_bnc
    return jnp.transpose(out, (0, 2, 1)).reshape(B, C, H, W)


if __name__ == "__main__":
    # Small shapes consistent with the module (in_dim must be >= 8 so C//8 >= 1).
    # N = 256 with TQ = TK = 128 exercises the flash path (2 KV steps) and the
    # accumulator init/finalize logic.
    B, C, H, W = 2, 32, 16, 16
    C8 = C // 8

    key = jax.random.PRNGKey(0)
    k_x, k_wq, k_bq, k_wk, k_bk, k_wv, k_bv = jax.random.split(key, 7)

    x = jax.random.normal(k_x, (B, C, H, W), dtype=jnp.float32)

    # Conv2d 1x1 weights stored as (C_in, C_out).
    wq = jax.random.normal(k_wq, (C, C8), dtype=jnp.float32) * 0.1
    bq = jax.random.normal(k_bq, (C8,), dtype=jnp.float32) * 0.1
    wk = jax.random.normal(k_wk, (C, C8), dtype=jnp.float32) * 0.1
    bk = jax.random.normal(k_bk, (C8,), dtype=jnp.float32) * 0.1
    wv = jax.random.normal(k_wv, (C, C), dtype=jnp.float32) * 0.1
    bv = jax.random.normal(k_bv, (C,), dtype=jnp.float32) * 0.1
    # PyTorch inits gamma to 0 (out == x); use a nonzero value so the attention
    # path is actually exercised by the check below.
    gamma = jnp.array([0.5], dtype=jnp.float32)

    out = pam_forward(x, wq, bq, wk, bk, wv, bv, gamma)
    out = jax.block_until_ready(out)

    ref = pam_reference(x, wq, bq, wk, bk, wv, bv, gamma)
    # bf16 MXU operands + approx reciprocal -> slightly looser tolerance.
    err = float(jnp.max(jnp.abs(out - ref)))
    if not jnp.allclose(out, ref, atol=2e-2, rtol=2e-2):
        raise AssertionError(
            f"Pallas PAM output does not match reference (max abs err {err})")
    print("KERNEL_OK")
</pallas_src>

<mosaic_0001>
module attributes {stable_mosaic.version = 11 : i64} {
  func.func @_pam_flash_kernel(%arg0: i32, %arg1: i32, %arg2: i32, %arg3: memref<1x128x32xf32, #tpu.memory_space<vmem>>, %arg4: memref<1x128x32xf32, #tpu.memory_space<vmem>>, %arg5: memref<32x32xbf16, #tpu.memory_space<vmem>>, %arg6: memref<1x32xf32, #tpu.memory_space<vmem>>, %arg7: memref<32x32xbf16, #tpu.memory_space<vmem>>, %arg8: memref<1x32xf32, #tpu.memory_space<vmem>>, %arg9: memref<1x1xf32, #tpu.memory_space<smem>>, %arg10: memref<1x128x32xf32, #tpu.memory_space<vmem>>, %arg11: memref<128x32xbf16, #tpu.memory_space<vmem>>, %arg12: memref<128x1xf32, #tpu.memory_space<vmem>>, %arg13: memref<128x1xf32, #tpu.memory_space<vmem>>, %arg14: memref<128x32xf32, #tpu.memory_space<vmem>>) attributes {dimension_semantics = [#tpu.dimension_semantics<parallel>, #tpu.dimension_semantics<parallel>, #tpu.dimension_semantics<arbitrary>], iteration_bounds = array<i64: 2, 2, 2>, scalar_prefetch = 0 : i64, scratch_operands = 4 : i64, tpu.core_type = #tpu.core_type<tc>, window_params = [{transform_indices = @transform_0, window_bounds = array<i64: 1, 128, 32>}, {transform_indices = @transform_1, window_bounds = array<i64: 1, 128, 32>}, {pipeline_mode = #tpu.pipeline_mode<synchronous>, transform_indices = @transform_2, window_bounds = array<i64: 32, 32>}, {pipeline_mode = #tpu.pipeline_mode<synchronous>, transform_indices = @transform_3, window_bounds = array<i64: 1, 32>}, {pipeline_mode = #tpu.pipeline_mode<synchronous>, transform_indices = @transform_4, window_bounds = array<i64: 32, 32>}, {pipeline_mode = #tpu.pipeline_mode<synchronous>, transform_indices = @transform_5, window_bounds = array<i64: 1, 32>}, {transform_indices = @transform_6, window_bounds = array<i64: 1, 1>}, {transform_indices = @transform_7, window_bounds = array<i64: 1, 128, 32>}]} {
    %c0_i32 = arith.constant 0 : i32
    %0 = arith.cmpi eq, %arg2, %c0_i32 : i32
    %1 = arith.extui %0 : i1 to i32
    %c0_i32_0 = arith.constant 0 : i32
    %2 = arith.cmpi ne, %1, %c0_i32_0 : i32
    scf.if %2 {
      %c0_26 = arith.constant 0 : index
      %c0_27 = arith.constant 0 : index
      %c0_28 = arith.constant 0 : index
      %40 = vector.load %arg3[%c0_26, %c0_27, %c0_28] : memref<1x128x32xf32, #tpu.memory_space<vmem>>, vector<1x128x32xf32>
      %41 = vector.shape_cast %40 : vector<1x128x32xf32> to vector<128x32xf32>
      %42 = arith.truncf %41 : vector<128x32xf32> to vector<128x32xbf16>
      %c0_29 = arith.constant 0 : index
      %c0_30 = arith.constant 0 : index
      %43 = vector.load %arg5[%c0_29, %c0_30] : memref<32x32xbf16, #tpu.memory_space<vmem>>, vector<32x32xbf16>
      %cst_31 = arith.constant dense<0.000000e+00> : vector<128x32xf32>
      %44 = tpu.matmul %42, %43, %cst_31 {dimension_numbers = #tpu.dot_dimension_numbers<[1], [0], [0], [1], [0, 0, 1, 1], [], []>} : vector<128x32xbf16>, vector<32x32xbf16>, vector<128x32xf32> -> vector<128x32xf32>
      %c0_32 = arith.constant 0 : index
      %c0_33 = arith.constant 0 : index
      %45 = vector.load %arg6[%c0_32, %c0_33] : memref<1x32xf32, #tpu.memory_space<vmem>>, vector<1x32xf32>
      %46 = vector.broadcast %45 : vector<1x32xf32> to vector<128x32xf32>
      %47 = arith.addf %44, %46 : vector<128x32xf32>
      %48 = arith.truncf %47 : vector<128x32xf32> to vector<128x32xbf16>
      %c0_34 = arith.constant 0 : index
      %c0_35 = arith.constant 0 : index
      %49 = vector.load %arg11[%c0_34, %c0_35] : memref<128x32xbf16, #tpu.memory_space<vmem>>, vector<128x32xbf16>
      tpu.vector_store %arg11[%c0_34, %c0_35], %48 {strides = array<i32>} : memref<128x32xbf16, #tpu.memory_space<vmem>>, vector<128x32xbf16>,
      %cst_36 = arith.constant 0xFF800000 : f32
      %50 = vector.broadcast %cst_36 : f32 to vector<128x1xf32>
      %c0_37 = arith.constant 0 : index
      %c0_38 = arith.constant 0 : index
      %51 = vector.load %arg12[%c0_37, %c0_38] : memref<128x1xf32, #tpu.memory_space<vmem>>, vector<128x1xf32>
      tpu.vector_store %arg12[%c0_37, %c0_38], %50 {strides = array<i32>} : memref<128x1xf32, #tpu.memory_space<vmem>>, vector<128x1xf32>,
      %cst_39 = arith.constant 0.000000e+00 : f32
      %52 = vector.broadcast %cst_39 : f32 to vector<128x1xf32>
      %c0_40 = arith.constant 0 : index
      %c0_41 = arith.constant 0 : index
      %53 = vector.load %arg13[%c0_40, %c0_41] : memref<128x1xf32, #tpu.memory_space<vmem>>, vector<128x1xf32>
      tpu.vector_store %arg13[%c0_40, %c0_41], %52 {strides = array<i32>} : memref<128x1xf32, #tpu.memory_space<vmem>>, vector<128x1xf32>,
      %cst_42 = arith.constant 0.000000e+00 : f32
      %54 = vector.broadcast %cst_42 : f32 to vector<128x32xf32>
      %c0_43 = arith.constant 0 : index
      %c0_44 = arith.constant 0 : index
      %55 = vector.load %arg14[%c0_43, %c0_44] : memref<128x32xf32, #tpu.memory_space<vmem>>, vector<128x32xf32>
      tpu.vector_store %arg14[%c0_43, %c0_44], %54 {strides = array<i32>} : memref<128x32xf32, #tpu.memory_space<vmem>>, vector<128x32xf32>,
    } else {
    }
    %c0 = arith.constant 0 : index
    %c0_1 = arith.constant 0 : index
    %c0_2 = arith.constant 0 : index
    %3 = vector.load %arg4[%c0, %c0_1, %c0_2] : memref<1x128x32xf32, #tpu.memory_space<vmem>>, vector<1x128x32xf32>
    %4 = vector.shape_cast %3 : vector<1x128x32xf32> to vector<128x32xf32>
    %5 = arith.truncf %4 : vector<128x32xf32> to vector<128x32xbf16>
    %c0_3 = arith.constant 0 : index
    %c0_4 = arith.constant 0 : index
    %6 = vector.load %arg11[%c0_3, %c0_4] : memref<128x32xbf16, #tpu.memory_space<vmem>>, vector<128x32xbf16>
    %cst = arith.constant dense<0.000000e+00> : vector<128x128xf32>
    %7 = tpu.matmul %6, %5, %cst {dimension_numbers = #tpu.dot_dimension_numbers<[1], [1], [0], [0], [0, 0, 1, 0], [], []>} : vector<128x32xbf16>, vector<128x32xbf16>, vector<128x128xf32> -> vector<128x128xf32>
    %c0_5 = arith.constant 0 : index
    %c0_6 = arith.constant 0 : index
    %8 = vector.load %arg12[%c0_5, %c0_6] : memref<128x1xf32, #tpu.memory_space<vmem>>, vector<128x1xf32>
    %cst_7 = arith.constant dense<0xFF800000> : vector<128xf32>
    %9 = vector.multi_reduction <maximumf>, %7, %cst_7 [1] : vector<128x128xf32> to vector<128xf32>
    %10 = vector.shape_cast %9 : vector<128xf32> to vector<128x1xf32>
    %11 = arith.maximumf %8, %10 : vector<128x1xf32>
    %12 = arith.subf %8, %11 : vector<128x1xf32>
    %13 = math.exp %12 : vector<128x1xf32>
    %14 = vector.broadcast %11 : vector<128x1xf32> to vector<128x128xf32>
    %15 = arith.subf %7, %14 : vector<128x128xf32>
    %16 = math.exp %15 : vector<128x128xf32>
    %c0_8 = arith.constant 0 : index
    %c0_9 = arith.constant 0 : index
    %17 = vector.load %arg13[%c0_8, %c0_9] : memref<128x1xf32, #tpu.memory_space<vmem>>, vector<128x1xf32>
    %18 = arith.mulf %13, %17 : vector<128x1xf32>
    %cst_10 = arith.constant dense<0.000000e+00> : vector<128xf32>
    %19 = vector.multi_reduction <add>, %16, %cst_10 [1] : vector<128x128xf32> to vector<128xf32>
    %20 = vector.shape_cast %19 : vector<128xf32> to vector<128x1xf32>
    %21 = arith.addf %18, %20 : vector<128x1xf32>
    %c0_11 = arith.constant 0 : index
    %c0_12 = arith.constant 0 : index
    %22 = vector.load %arg13[%c0_11, %c0_12] : memref<128x1xf32, #tpu.memory_space<vmem>>, vector<128x1xf32>
    tpu.vector_store %arg13[%c0_11, %c0_12], %21 {strides = array<i32>} : memref<128x1xf32, #tpu.memory_space<vmem>>, vector<128x1xf32>,
    %c0_13 = arith.constant 0 : index
    %c0_14 = arith.constant 0 : index
    %23 = vector.load %arg12[%c0_13, %c0_14] : memref<128x1xf32, #tpu.memory_space<vmem>>, vector<128x1xf32>
    tpu.vector_store %arg12[%c0_13, %c0_14], %11 {strides = array<i32>} : memref<128x1xf32, #tpu.memory_space<vmem>>, vector<128x1xf32>,
    %c0_15 = arith.constant 0 : index
    %c0_16 = arith.constant 0 : index
    %24 = vector.load %arg7[%c0_15, %c0_16] : memref<32x32xbf16, #tpu.memory_space<vmem>>, vector<32x32xbf16>
    %cst_17 = arith.constant dense<0.000000e+00> : vector<128x32xf32>
    %25 = tpu.matmul %5, %24, %cst_17 {dimension_numbers = #tpu.dot_dimension_numbers<[1], [0], [0], [1], [0, 0, 1, 1], [], []>} : vector<128x32xbf16>, vector<32x32xbf16>, vector<128x32xf32> -> vector<128x32xf32>
    %c0_18 = arith.constant 0 : index
    %c0_19 = arith.constant 0 : index
    %26 = vector.load %arg8[%c0_18, %c0_19] : memref<1x32xf32, #tpu.memory_space<vmem>>, vector<1x32xf32>
    %27 = vector.broadcast %26 : vector<1x32xf32> to vector<128x32xf32>
    %28 = arith.addf %25, %27 : vector<128x32xf32>
    %c0_20 = arith.constant 0 : index
    %c0_21 = arith.constant 0 : index
    %29 = vector.load %arg14[%c0_20, %c0_21] : memref<128x32xf32, #tpu.memory_space<vmem>>, vector<128x32xf32>
    %30 = vector.broadcast %13 : vector<128x1xf32> to vector<128x32xf32>
    %31 = arith.mulf %30, %29 : vector<128x32xf32>
    %32 = arith.truncf %16 : vector<128x128xf32> to vector<128x128xbf16>
    %33 = arith.truncf %28 : vector<128x32xf32> to vector<128x32xbf16>
    %cst_22 = arith.constant dense<0.000000e+00> : vector<128x32xf32>
    %34 = tpu.matmul %32, %33, %cst_22 {dimension_numbers = #tpu.dot_dimension_numbers<[1], [0], [0], [1], [0, 0, 1, 1], [], []>} : vector<128x128xbf16>, vector<128x32xbf16>, vector<128x32xf32> -> vector<128x32xf32>
    %35 = arith.addf %31, %34 : vector<128x32xf32>
    %c0_23 = arith.constant 0 : index
    %c0_24 = arith.constant 0 : index
    %36 = vector.load %arg14[%c0_23, %c0_24] : memref<128x32xf32, #tpu.memory_space<vmem>>, vector<128x32xf32>
    tpu.vector_store %arg14[%c0_23, %c0_24], %35 {strides = array<i32>} : memref<128x32xf32, #tpu.memory_space<vmem>>, vector<128x32xf32>,
    %c1_i32 = arith.constant 1 : i32
    %37 = arith.cmpi eq, %arg2, %c1_i32 : i32
    %38 = arith.extui %37 : i1 to i32
    %c0_i32_25 = arith.constant 0 : i32
    %39 = arith.cmpi ne, %38, %c0_i32_25 : i32
    scf.if %39 {
      %c0_26 = arith.constant 0 : index
      %c0_27 = arith.constant 0 : index
      %40 = vector.load %arg13[%c0_26, %c0_27] : memref<128x1xf32, #tpu.memory_space<vmem>>, vector<128x1xf32>
      %41 = tpu.reciprocal %40 {approx = true} : vector<128x1xf32> -> vector<128x1xf32>
      %c0_28 = arith.constant 0 : index
      %c0_29 = arith.constant 0 : index
      %42 = vector.load %arg14[%c0_28, %c0_29] : memref<128x32xf32, #tpu.memory_space<vmem>>, vector<128x32xf32>
      %43 = vector.broadcast %41 : vector<128x1xf32> to vector<128x32xf32>
      %44 = arith.mulf %42, %43 : vector<128x32xf32>
      %c0_30 = arith.constant 0 : index
      %c0_31 = arith.constant 0 : index
      %45 = memref.load %arg9[%c0_30, %c0_31] : memref<1x1xf32, #tpu.memory_space<smem>>
      %46 = vector.broadcast %45 : f32 to vector<128x32xf32>
      %47 = arith.mulf %46, %44 : vector<128x32xf32>
      %c0_32 = arith.constant 0 : index
      %c0_33 = arith.constant 0 : index
      %c0_34 = arith.constant 0 : index
      %48 = vector.load %arg3[%c0_32, %c0_33, %c0_34] : memref<1x128x32xf32, #tpu.memory_space<vmem>>, vector<1x128x32xf32>
      %49 = vector.shape_cast %48 : vector<1x128x32xf32> to vector<128x32xf32>
      %50 = arith.addf %47, %49 : vector<128x32xf32>
      %c0_35 = arith.constant 0 : index
      %c0_36 = arith.constant 0 : index
      %c0_37 = arith.constant 0 : index
      %51 = vector.load %arg10[%c0_35, %c0_36, %c0_37] : memref<1x128x32xf32, #tpu.memory_space<vmem>>, vector<1x128x32xf32>
      %52 = vector.shape_cast %51 : vector<1x128x32xf32> to vector<128x32xf32>
      %53 = vector.shape_cast %50 : vector<128x32xf32> to vector<1x128x32xf32>
      tpu.vector_store %arg10[%c0_35, %c0_36, %c0_37], %53 {strides = array<i32>} : memref<1x128x32xf32, #tpu.memory_space<vmem>>, vector<1x128x32xf32>,
    } else {
    }
    return
  }
  func.func @transform_0(%arg0: i32, %arg1: i32, %arg2: i32) -> (i32, i32, i32) {
    %c0_i32 = arith.constant 0 : i32
    %c0_i32_0 = arith.constant 0 : i32
    return %arg0, %arg1, %c0_i32 : i32, i32, i32
  }
  func.func @transform_1(%arg0: i32, %arg1: i32, %arg2: i32) -> (i32, i32, i32) {
    %c0_i32 = arith.constant 0 : i32
    %c0_i32_0 = arith.constant 0 : i32
    return %arg0, %arg2, %c0_i32 : i32, i32, i32
  }
  func.func @transform_2(%arg0: i32, %arg1: i32, %arg2: i32) -> (i32, i32) {
    %c0_i32 = arith.constant 0 : i32
    %c0_i32_0 = arith.constant 0 : i32
    %c0_i32_1 = arith.constant 0 : i32
    return %c0_i32, %c0_i32_0 : i32, i32
  }
  func.func @transform_3(%arg0: i32, %arg1: i32, %arg2: i32) -> (i32, i32) {
    %c0_i32 = arith.constant 0 : i32
    %c0_i32_0 = arith.constant 0 : i32
    %c0_i32_1 = arith.constant 0 : i32
    return %c0_i32, %c0_i32_0 : i32, i32
  }
  func.func @transform_4(%arg0: i32, %arg1: i32, %arg2: i32) -> (i32, i32) {
    %c0_i32 = arith.constant 0 : i32
    %c0_i32_0 = arith.constant 0 : i32
    %c0_i32_1 = arith.constant 0 : i32
    return %c0_i32, %c0_i32_0 : i32, i32
  }
  func.func @transform_5(%arg0: i32, %arg1: i32, %arg2: i32) -> (i32, i32) {
    %c0_i32 = arith.constant 0 : i32
    %c0_i32_0 = arith.constant 0 : i32
    %c0_i32_1 = arith.constant 0 : i32
    return %c0_i32, %c0_i32_0 : i32, i32
  }
  func.func @transform_6(%arg0: i32, %arg1: i32, %arg2: i32) -> (i32, i32) {
    %c0_i32 = arith.constant 0 : i32
    %c0_i32_0 = arith.constant 0 : i32
    %c0_i32_1 = arith.constant 0 : i32
    return %c0_i32, %c0_i32_0 : i32, i32
  }
  func.func @transform_7(%arg0: i32, %arg1: i32, %arg2: i32) -> (i32, i32, i32) {
    %c0_i32 = arith.constant 0 : i32
    %c0_i32_0 = arith.constant 0 : i32
    return %arg0, %arg1, %c0_i32 : i32, i32, i32
  }
}

</mosaic_0001>

<llo_original>
// kernel: tpu_custom_call.1
$region0: #{tpu_custom_call.1}
  #allocation0 [shape = 'u32[]', space=smem, size = 0x4, offset = 0x4, fixed_abs, tag = 'smem constant byte address 0x4 - core index']
  #allocation1 [shape = 'u32[72,128]{1,0:T(1,128)}', space=vmem, size = 0x9000, scoped, tag = 'internal scratch']
  #allocation2 [shape = 'bf16[128,32]{1,0:T(8,128)(2,1)}', space=vmem, size = 0x8000, scoped, tag = 'scratch operand']
  #allocation3 [shape = 'f32[128,1]{1,0:T(8,128)}', space=vmem, size = 0x10000, scoped, tag = 'scratch operand']
  #allocation4 [shape = 'f32[128,1]{1,0:T(8,128)}', space=vmem, size = 0x10000, scoped, tag = 'scratch operand']
  #allocation5 [shape = 'f32[128,32]{1,0:T(8,128)}', space=vmem, size = 0x10000, scoped, tag = 'scratch operand']
  #allocation6 [shape = 'f32[1,1]{1,0:T(1,128)S(6)}', space=smem, size = 0x200, scoped, tag = 'scoped memory for tpu_custom_call.1']
  %s0 = inlined_call_operand.vmem [shape: f32[2,256,32], index: 0, kind: input, shape index: {}]
  %s1 = inlined_call_operand.vmem [shape: f32[2,256,32], index: 1, kind: input, shape index: {}]
  %s2 = inlined_call_operand.vmem [shape: bf16[32,32], index: 2, kind: input, shape index: {}]
  %s3 = inlined_call_operand.vmem [shape: f32[1,32], index: 3, kind: input, shape index: {}]
  %s4 = inlined_call_operand.vmem [shape: bf16[32,32], index: 4, kind: input, shape index: {}]
  %s5 = inlined_call_operand.vmem [shape: f32[1,32], index: 5, kind: input, shape index: {}]
  %s6 = inlined_call_operand.<no memory space> [shape: f32[1,1], index: 6, kind: input, shape index: {}]
  %s7 = inlined_call_operand.vmem [shape: f32[2,256,32], index: 7, kind: output, shape index: {}]
  %s8 = sld [smem:[#allocation0]]
  $region69: #{tpu_custom_call.1} parent=0
    _
  %s10 = ssub.s32 1, %s8
  %s11 = scalar_select 0, %s10, %s8
  %12 = sst [smem:[#allocation6]] %s6
  loop: start=0, step=1, limit=10
  $region2: #{tpu_custom_call.1} parent=0 // loop_pre_header
    _
  $region3: #{tpu_custom_call.1} parent=0 // loop_header
    %s14 = sphi 0, %s18
    %p15 = scmp.ge.s32.totalorder %s14, 10
    %s21 = sphi 0, %s40
    %s22 = sphi 0, %s36
    %s23 = sphi 0, %s32
    %s24 = sphi 0, %s21
    %s25 = sphi 0, %s22
    %s26 = sphi 0, %s23
    %s27 = sphi 0, %s24
    %s28 = sphi 0, %s25
    %s29 = sphi 0, %s26
    %s45 = sphi 0, %s47
    %s48 = sphi 0, %s45
    %s49 = sphi 0, %s48
    %s65 = sphi 0, %s49
    %s73 = sphi 0, %s75
    %s76 = sphi 0, %s73
    %s77 = sphi 0, %s76
    %s93 = sphi 0, %s77
    %s97 = sphi 0, %s97
    %s99 = sphi 0, %s97
    %s100 = sphi 0, %s99
    %s114 = sphi 0, %s100
    %s118 = sphi 0, %s118
    %s120 = sphi 0, %s118
    %s121 = sphi 0, %s120
    %s135 = sphi 0, %s121
    %s139 = sphi 0, %s139
    %s141 = sphi 0, %s139
    %s142 = sphi 0, %s141
    %s156 = sphi 0, %s142
    %s160 = sphi 0, %s160
    %s162 = sphi 0, %s160
    %s163 = sphi 0, %s162
    %s177 = sphi 0, %s163
    %s181 = sphi 0, %s181
    %s183 = sphi 0, %s181
    %s184 = sphi 0, %s183
    %s198 = sphi 0, %s184
    %s206 = sphi 0, %s208
    %s209 = sphi 0, %s206
    %s210 = sphi 0, %s209
    %s226 = sphi 0, %s210
  $region4: #{tpu_custom_call.1} parent=0 // loop_header_branch
    %17 = sbr.rel (%p15) target = $region8
  $region5: #{tpu_custom_call.1} parent=0 // loop_body
    %s19 = ssub.s32 %s14, 1
    %s20 = ssub.s32 %s14, 2
    %s30 = sadd.s32 1, %s23
    %p31 = scmp.ge.s32.totalorder %s30, 2
    %s32 = scalar_select %p31, 0, %s30
    %s33 = sadd.s32 1, %s22
    %s34 = scalar_select %p31, %s33, %s22
    %p35 = scmp.ge.s32.totalorder %s34, 2
    %s36 = scalar_select %p35, 0, %s34
    %s37 = sadd.s32 1, %s21
    %s38 = scalar_select %p35, %s37, %s21
    %p39 = scmp.ge.s32.totalorder %s38, 2
    %s40 = scalar_select %p39, 0, %s38
    %s41 = ssub.s32 %s21, %s40
    %s42 = ssub.s32 %s22, %s36
    %s43 = sor.u32 %s41, %s42
    %p44 = scmp.eq.s32.totalorder %s43, 0
    %s46 = sadd.s32 %s45, 1
    %s47 = scalar_select %p44, %s45, %s46
    %p50 = pneg %p44
    %p51 = scmp.eq.s32.totalorder %s14, 7
    %p52 = por %p50, %p51
    %p53 = scmp.ne.s32.totalorder %s45, %s48
    %p54 = scmp.eq.s32.totalorder %s14, 0
    %p55 = por %p53, %p54
    %p56 = scmp.ne.s32.totalorder %s45, %s48
    %p57 = scmp.eq.s32.totalorder %s19, 7
    %p58 = por %p56, %p57
    %p59 = scmp.ne.s32.totalorder %s48, %s49
    %p60 = scmp.eq.s32.totalorder %s19, 0
    %p61 = por %p59, %p60
    %p62 = scmp.ne.s32.totalorder %s48, %s49
    %p63 = scmp.eq.s32.totalorder %s20, 7
    %p64 = por %p62, %p63
    %p66 = scmp.ne.s32.totalorder %s49, %s65
    %p67 = scmp.eq.s32.totalorder %s20, 0
    %p68 = por %p66, %p67
    %s69 = ssub.s32 %s21, %s40
    %s70 = ssub.s32 %s23, %s32
    %s71 = sor.u32 %s69, %s70
    %p72 = scmp.eq.s32.totalorder %s71, 0
    %s74 = sadd.s32 %s73, 1
    %s75 = scalar_select %p72, %s73, %s74
    %p78 = pneg %p72
    %p79 = scmp.eq.s32.totalorder %s14, 7
    %p80 = por %p78, %p79
    %p81 = scmp.ne.s32.totalorder %s73, %s76
    %p82 = scmp.eq.s32.totalorder %s14, 0
    %p83 = por %p81, %p82
    %p84 = scmp.ne.s32.totalorder %s73, %s76
    %p85 = scmp.eq.s32.totalorder %s19, 7
    %p86 = por %p84, %p85
    %p87 = scmp.ne.s32.totalorder %s76, %s77
    %p88 = scmp.eq.s32.totalorder %s19, 0
    %p89 = por %p87, %p88
    %p90 = scmp.ne.s32.totalorder %s76, %s77
    %p91 = scmp.eq.s32.totalorder %s20, 7
    %p92 = por %p90, %p91
    %p94 = scmp.ne.s32.totalorder %s77, %s93
    %p95 = scmp.eq.s32.totalorder %s20, 0
    %p96 = por %p94, %p95
    %s98 = sadd.s32 %s97, 1
    %p101 = scmp.eq.s32.totalorder %s14, 7
    %p102 = scmp.ne.s32.totalorder %s97, %s99
    %p103 = scmp.eq.s32.totalorder %s14, 0
    %p104 = por %p102, %p103
    %p105 = scmp.ne.s32.totalorder %s97, %s99
    %p106 = scmp.eq.s32.totalorder %s19, 7
    %p107 = por %p105, %p106
    %p108 = scmp.ne.s32.totalorder %s99, %s100
    %p109 = scmp.eq.s32.totalorder %s19, 0
    %p110 = por %p108, %p109
    %p111 = scmp.ne.s32.totalorder %s99, %s100
    %p112 = scmp.eq.s32.totalorder %s20, 7
    %p113 = por %p111, %p112
    %p115 = scmp.ne.s32.totalorder %s100, %s114
    %p116 = scmp.eq.s32.totalorder %s20, 0
    %p117 = por %p115, %p116
    %s119 = sadd.s32 %s118, 1
    %p122 = scmp.eq.s32.totalorder %s14, 7
    %p123 = scmp.ne.s32.totalorder %s118, %s120
    %p124 = scmp.eq.s32.totalorder %s14, 0
    %p125 = por %p123, %p124
    %p126 = scmp.ne.s32.totalorder %s118, %s120
    %p127 = scmp.eq.s32.totalorder %s19, 7
    %p128 = por %p126, %p127
    %p129 = scmp.ne.s32.totalorder %s120, %s121
    %p130 = scmp.eq.s32.totalorder %s19, 0
    %p131 = por %p129, %p130
    %p132 = scmp.ne.s32.totalorder %s120, %s121
    %p133 = scmp.eq.s32.totalorder %s20, 7
    %p134 = por %p132, %p133
    %p136 = scmp.ne.s32.totalorder %s121, %s135
    %p137 = scmp.eq.s32.totalorder %s20, 0
    %p138 = por %p136, %p137
    %s140 = sadd.s32 %s139, 1
    %p143 = scmp.eq.s32.totalorder %s14, 7
    %p144 = scmp.ne.s32.totalorder %s139, %s141
    %p145 = scmp.eq.s32.totalorder %s14, 0
    %p146 = por %p144, %p145
    %p147 = scmp.ne.s32.totalorder %s139, %s141
    %p148 = scmp.eq.s32.totalorder %s19, 7
    %p149 = por %p147, %p148
    %p150 = scmp.ne.s32.totalorder %s141, %s142
    %p151 = scmp.eq.s32.totalorder %s19, 0
    %p152 = por %p150, %p151
    %p153 = scmp.ne.s32.totalorder %s141, %s142
    %p154 = scmp.eq.s32.totalorder %s20, 7
    %p155 = por %p153, %p154
    %p157 = scmp.ne.s32.totalorder %s142, %s156
    %p158 = scmp.eq.s32.totalorder %s20, 0
    %p159 = por %p157, %p158
    %s161 = sadd.s32 %s160, 1
    %p164 = scmp.eq.s32.totalorder %s14, 7
    %p165 = scmp.ne.s32.totalorder %s160, %s162
    %p166 = scmp.eq.s32.totalorder %s14, 0
    %p167 = por %p165, %p166
    %p168 = scmp.ne.s32.totalorder %s160, %s162
    %p169 = scmp.eq.s32.totalorder %s19, 7
    %p170 = por %p168, %p169
    %p171 = scmp.ne.s32.totalorder %s162, %s163
    %p172 = scmp.eq.s32.totalorder %s19, 0
    %p173 = por %p171, %p172
    %p174 = scmp.ne.s32.totalorder %s162, %s163
    %p175 = scmp.eq.s32.totalorder %s20, 7
    %p176 = por %p174, %p175
    %p178 = scmp.ne.s32.totalorder %s163, %s177
    %p179 = scmp.eq.s32.totalorder %s20, 0
    %p180 = por %p178, %p179
    %s182 = sadd.s32 %s181, 1
    %p185 = scmp.eq.s32.totalorder %s14, 7
    %p186 = scmp.ne.s32.totalorder %s181, %s183
    %p187 = scmp.eq.s32.totalorder %s14, 0
    %p188 = por %p186, %p187
    %p189 = scmp.ne.s32.totalorder %s181, %s183
    %p190 = scmp.eq.s32.totalorder %s19, 7
    %p191 = por %p189, %p190
    %p192 = scmp.ne.s32.totalorder %s183, %s184
    %p193 = scmp.eq.s32.totalorder %s19, 0
    %p194 = por %p192, %p193
    %p195 = scmp.ne.s32.totalorder %s183, %s184
    %p196 = scmp.eq.s32.totalorder %s20, 7
    %p197 = por %p195, %p196
    %p199 = scmp.ne.s32.totalorder %s184, %s198
    %p200 = scmp.eq.s32.totalorder %s20, 0
    %p201 = por %p199, %p200
    %s202 = ssub.s32 %s21, %s40
    %s203 = ssub.s32 %s22, %s36
    %s204 = sor.u32 %s202, %s203
    %p205 = scmp.eq.s32.totalorder %s204, 0
    %s207 = sadd.s32 %s206, 1
    %s208 = scalar_select %p205, %s206, %s207
    %p211 = pneg %p205
    %p212 = scmp.eq.s32.totalorder %s14, 7
    %p213 = por %p211, %p212
    %p214 = scmp.ne.s32.totalorder %s206, %s209
    %p215 = scmp.eq.s32.totalorder %s14, 0
    %p216 = por %p214, %p215
    %p217 = scmp.ne.s32.totalorder %s206, %s209
    %p218 = scmp.eq.s32.totalorder %s19, 7
    %p219 = por %p217, %p218
    %p220 = scmp.ne.s32.totalorder %s209, %s210
    %p221 = scmp.eq.s32.totalorder %s19, 0
    %p222 = por %p220, %p221
    %p223 = scmp.ne.s32.totalorder %s209, %s210
    %p224 = scmp.eq.s32.totalorder %s20, 7
    %p225 = por %p223, %p224
    %p227 = scmp.ne.s32.totalorder %s210, %s226
    %p228 = scmp.eq.s32.totalorder %s20, 0
    %p229 = por %p227, %p228
    %p230 = scmp.le.s32.totalorder 1, %s14
    %p231 = scmp.lt.s32.totalorder %s14, 9
    %p232 = pnand %p230, %p231
    %p233 = pneg %p232
    // Predicated region
    $region9: #{tpu_custom_call.1} parent=5 // pred_check
      _
    $region10: #{tpu_custom_call.1} parent=5 // pred_check_branch
      %235 = sbr.rel (%p232) target = $region12
    $region11: #{tpu_custom_call.1} parent=5 // pred_region
      %s236 = ssub.s32 %s14, 1
      // Predicated region
      $region13: #{tpu_custom_call.1} parent=11 // pred_check
        %p237 = pneg %p110
      $region14: #{tpu_custom_call.1} parent=11 // pred_check_branch
        %239 = sbr.rel (%p237) target = $region16
      $region15: #{tpu_custom_call.1} parent=11 // pred_region
        _
      $region16: #{tpu_custom_call.1} parent=11 // pred_fallthru
        _
      // Predicated region
      $region17: #{tpu_custom_call.1} parent=11 // pred_check
        %p240 = pneg %p131
      $region18: #{tpu_custom_call.1} parent=11 // pred_check_branch
        %242 = sbr.rel (%p240) target = $region20
      $region19: #{tpu_custom_call.1} parent=11 // pred_region
        _
      $region20: #{tpu_custom_call.1} parent=11 // pred_fallthru
        _
      // Predicated region
      $region21: #{tpu_custom_call.1} parent=11 // pred_check
        %p243 = pneg %p152
      $region22: #{tpu_custom_call.1} parent=11 // pred_check_branch
        %245 = sbr.rel (%p243) target = $region24
      $region23: #{tpu_custom_call.1} parent=11 // pred_region
        _
      $region24: #{tpu_custom_call.1} parent=11 // pred_fallthru
        _
      // Predicated region
      $region25: #{tpu_custom_call.1} parent=11 // pred_check
        %p246 = pneg %p173
      $region26: #{tpu_custom_call.1} parent=11 // pred_check_branch
        %248 = sbr.rel (%p246) target = $region28
      $region27: #{tpu_custom_call.1} parent=11 // pred_region
        _
      $region28: #{tpu_custom_call.1} parent=11 // pred_fallthru
        _
      // Predicated region
      $region29: #{tpu_custom_call.1} parent=11 // pred_check
        %p249 = pneg %p194
      $region30: #{tpu_custom_call.1} parent=11 // pred_check_branch
        %251 = sbr.rel (%p249) target = $region32
      $region31: #{tpu_custom_call.1} parent=11 // pred_region
        _
      $region32: #{tpu_custom_call.1} parent=11 // pred_fallthru
        _
    $region12: #{tpu_custom_call.1} parent=5 // pred_fallthru
      _
    %p252 = scmp.lt.s32.totalorder %s14, 8
    // Predicated region
    $region33: #{tpu_custom_call.1} parent=5 // pred_check
      %p253 = pneg %p252
    $region34: #{tpu_custom_call.1} parent=5 // pred_check_branch
      %255 = sbr.rel (%p253) target = $region36
    $region35: #{tpu_custom_call.1} parent=5 // pred_region
      // Predicated region
      $region37: #{tpu_custom_call.1} parent=35 // pred_check
        %p256 = pneg %p55
      $region38: #{tpu_custom_call.1} parent=35 // pred_check_branch
        %258 = sbr.rel (%p256) target = $region40
      $region39: #{tpu_custom_call.1} parent=35 // pred_region
        %s259 = smul.u32 16, %s22
        %p260 = scmp.lt.s32.totalorder %s21, 1
        %s261 = scalar_select %p260, %s21, 1
        %p262 = scmp.lt.s32.totalorder %s259, 31
        %s263 = scalar_select %p262, %s259, 31
        %s264 = smul.addr %s261, 32
        %s265 = sadd.s32 %s263, %s264
        %s266 = smul.addr %s265, 8
        %s267 = scalar_lea.vmem %s0, %s266
        %s268 = smul.u32 16, %s22
      $region40: #{tpu_custom_call.1} parent=35 // pred_fallthru
        _
      // Predicated region
      $region41: #{tpu_custom_call.1} parent=35 // pred_check
        %p269 = pneg %p83
      $region42: #{tpu_custom_call.1} parent=35 // pred_check_branch
        %271 = sbr.rel (%p269) target = $region44
      $region43: #{tpu_custom_call.1} parent=35 // pred_region
        %s272 = smul.u32 16, %s23
        %p273 = scmp.lt.s32.totalorder %s21, 1
        %s274 = scalar_select %p273, %s21, 1
        %p275 = scmp.lt.s32.totalorder %s272, 31
        %s276 = scalar_select %p275, %s272, 31
        %s277 = smul.addr %s274, 32
        %s278 = sadd.s32 %s276, %s277
        %s279 = smul.addr %s278, 8
        %s280 = scalar_lea.vmem %s1, %s279
        %s281 = smul.u32 16, %s23
      $region44: #{tpu_custom_call.1} parent=35 // pred_fallthru
        _
    $region36: #{tpu_custom_call.1} parent=5 // pred_fallthru
      _
    %p282 = scmp.le.s32.totalorder 1, %s14
    %p283 = scmp.lt.s32.totalorder %s14, 9
    %p284 = pnand %p282, %p283
    %p285 = pneg %p284
    // Predicated region
    $region45: #{tpu_custom_call.1} parent=5 // pred_check
      _
    $region46: #{tpu_custom_call.1} parent=5 // pred_check_branch
      %287 = sbr.rel (%p284) target = $region48
    $region47: #{tpu_custom_call.1} parent=5 // pred_region
      %s288 = ssub.s32 %s14, 1
      %s289 = smul.u32 16, %s25
      %p290 = scmp.lt.s32.totalorder %s24, 1
      %s291 = scalar_select %p290, %s24, 1
      %p292 = scmp.lt.s32.totalorder %s289, 31
      %s293 = scalar_select %p292, %s289, 31
      %s294 = smul.addr %s291, 32
      %s295 = sadd.s32 %s293, %s294
      %s296 = smul.addr %s295, 8
      %s297 = scalar_lea.vmem %s0, %s296
      %p298 = pneg %p61
      %p299 = pneg %p58
      %s300 = smul.u32 16, %s26
      %p301 = scmp.lt.s32.totalorder %s24, 1
      %s302 = scalar_select %p301, %s24, 1
      %p303 = scmp.lt.s32.totalorder %s300, 31
      %s304 = scalar_select %p303, %s300, 31
      %s305 = smul.addr %s302, 32
      %s306 = sadd.s32 %s304, %s305
      %s307 = smul.addr %s306, 8
      %s308 = scalar_lea.vmem %s1, %s307
      %p309 = pneg %p89
      %p310 = pneg %p86
      %p311 = pneg %p110
      %p312 = pneg %p107
      %p313 = pneg %p131
      %p314 = pneg %p128
      %p315 = pneg %p152
      %p316 = pneg %p149
      %p317 = pneg %p173
      %p318 = pneg %p170
      %p319 = pneg %p194
      %p320 = pneg %p191
      %p321 = pneg %p222
      %p322 = pneg %p219
      %s323 = smul.u32 16, %s25
      %p324 = scmp.lt.s32.totalorder %s24, 1
      %s325 = scalar_select %p324, %s24, 1
      %p326 = scmp.lt.s32.totalorder %s323, 31
      %s327 = scalar_select %p326, %s323, 31
      %s328 = smul.addr %s325, 32
      %s329 = sadd.s32 %s327, %s328
      %s330 = smul.addr %s329, 8
      %s331 = scalar_lea.vmem %s7, %s330
      %s332 = smul.u32 16, %s25
      %p333 = scmp.lt.s32.totalorder %s24, 1
      %s334 = scalar_select %p333, %s24, 1
      %p335 = scmp.lt.s32.totalorder %s332, 31
      %s336 = scalar_select %p335, %s332, 31
      %s337 = smul.addr %s334, 32
      %s338 = sadd.s32 %s336, %s337
      %s339 = smul.addr %s338, 8
      %s340 = scalar_lea.vmem %s0, %s339
      %s341 = smul.u32 16, %s25
      %s342 = smul.u32 16, %s26
      %p343 = scmp.lt.s32.totalorder %s24, 1
      %s344 = scalar_select %p343, %s24, 1
      %p345 = scmp.lt.s32.totalorder %s342, 31
      %s346 = scalar_select %p345, %s342, 31
      %s347 = smul.addr %s344, 32
      %s348 = sadd.s32 %s346, %s347
      %s349 = smul.addr %s348, 8
      %s350 = scalar_lea.vmem %s1, %s349
      %s351 = smul.u32 16, %s26
      %s352 = smul.u32 16, %s25
      %p353 = scmp.lt.s32.totalorder %s24, 1
      %s354 = scalar_select %p353, %s24, 1
      %p355 = scmp.lt.s32.totalorder %s352, 31
      %s356 = scalar_select %p355, %s352, 31
      %s357 = smul.addr %s354, 32
      %s358 = sadd.s32 %s356, %s357
      %s359 = smul.addr %s358, 8
      %s360 = scalar_lea.vmem %s7, %s359
      %s361 = smul.u32 16, %s25
      %p363 = scmp.eq.s32.totalorder %s26, 0
      // Predicated region
      $region49: #{tpu_custom_call.1} parent=47 // pred_check
        %p364 = pneg %p363
      $region50: #{tpu_custom_call.1} parent=47 // pred_check_branch
        %366 = sbr.rel (%p364) target = $region52
      $region51: #{tpu_custom_call.1} parent=47 // pred_region
        %v367 = vld [vmem:[%s340] sm:$0xff]
        %v368 = vld [vmem:[%s340 + $0x8] sm:$0xff]
        %v369 = vld [vmem:[%s340 + $0x10] sm:$0xff]
        %v370 = vld [vmem:[%s340 + $0x18] sm:$0xff]
        %v371 = vld [vmem:[%s340 + $0x20] sm:$0xff]
        %v372 = vld [vmem:[%s340 + $0x28] sm:$0xff]
        %v373 = vld [vmem:[%s340 + $0x30] sm:$0xff]
        %v374 = vld [vmem:[%s340 + $0x38] sm:$0xff]
        %v375 = vld [vmem:[%s340 + $0x40] sm:$0xff]
        %v376 = vld [vmem:[%s340 + $0x48] sm:$0xff]
        %v377 = vld [vmem:[%s340 + $0x50] sm:$0xff]
        %v378 = vld [vmem:[%s340 + $0x58] sm:$0xff]
        %v379 = vld [vmem:[%s340 + $0x60] sm:$0xff]
        %v380 = vld [vmem:[%s340 + $0x68] sm:$0xff]
        %v381 = vld [vmem:[%s340 + $0x70] sm:$0xff]
        %v382 = vld [vmem:[%s340 + $0x78] sm:$0xff]
        %v383 = vpack.c.bf16 %v368, %v367
        %v384 = vpack.c.bf16 %v370, %v369
        %v385 = vpack.c.bf16 %v372, %v371
        %v386 = vpack.c.bf16 %v374, %v373
        %v387 = vpack.c.bf16 %v376, %v375
        %v388 = vpack.c.bf16 %v378, %v377
        %v389 = vpack.c.bf16 %v380, %v379
        %v390 = vpack.c.bf16 %v382, %v381
        %v391 = vld [vmem:[%s2] sm:$0xf]
        %v392 = vld [vmem:[%s2 + $0x4] sm:$0xf]
        %v393 = vld [vmem:[%s2 + $0x8] sm:$0xf]
        %v394 = vld [vmem:[%s2 + $0xc] sm:$0xf]
        %v395 = vld [vmem:[%s3] sm:$0x1]
        %v397 = vperm.slane %v395, 0
        %v403 = vunpack.c.l.b16 %v391
        %v404 = vunpack.c.l.b16 %v392
        %v405 = vunpack.c.l.b16 %v393
        %v406 = vunpack.c.l.b16 %v394
        %v407 = vpack.c.b16 %v404, %v403
        %v408 = vpack.c.b16 %v406, %v405
        %vm411 = vcmask 261120
        %v413 = vsel %vm411, %v383, 0
        %v416 = vsel %vm411, %v384, 0
        %v419 = vsel %vm411, %v385, 0
        %v422 = vsel %vm411, %v386, 0
        %v425 = vsel %vm411, %v387, 0
        %v428 = vsel %vm411, %v388, 0
        %v431 = vsel %vm411, %v389, 0
        %v434 = vsel %vm411, %v390, 0
        %436 = vmatpush.bf16.msra.mxu0 0
        %437 = vmatpush.bf16.msra.mxu0 0
        %438 = vmatpush.bf16.msra.mxu0 0
        %439 = vmatpush.bf16.msra.mxu0 0
        %440 = vmatpush.bf16.msra.mxu0 0
        %441 = vmatpush.bf16.msra.mxu0 0
        %442 = vmatpush.bf16.msra.mxu0 %v408
        %443 = vmatpush.bf16.msra.mxu0 %v407
        %444 = vmatmul.bf16.gmra.mxu0 %v413
        %v445 = vpop.f32.mrf.mxu0
        %v446 = vadd.f32 %v397, %v445
        %v447 = vpop.f32.mrf.mxu0
        %v448 = vadd.f32 %v397, %v447
        %449 = vmatmul.bf16.gmra.mxu0 %v416
        %v450 = vpop.f32.mrf.mxu0
        %v451 = vadd.f32 %v397, %v450
        %v452 = vpop.f32.mrf.mxu0
        %v453 = vadd.f32 %v397, %v452
        %454 = vmatmul.bf16.gmra.mxu0 %v419
        %v455 = vpop.f32.mrf.mxu0
        %v456 = vadd.f32 %v397, %v455
        %v457 = vpop.f32.mrf.mxu0
        %v458 = vadd.f32 %v397, %v457
        %459 = vmatmul.bf16.gmra.mxu0 %v422
        %v460 = vpop.f32.mrf.mxu0
        %v461 = vadd.f32 %v397, %v460
        %v462 = vpop.f32.mrf.mxu0
        %v463 = vadd.f32 %v397, %v462
        %464 = vmatmul.bf16.gmra.mxu0 %v425
        %v465 = vpop.f32.mrf.mxu0
        %v466 = vadd.f32 %v397, %v465
        %v467 = vpop.f32.mrf.mxu0
        %v468 = vadd.f32 %v397, %v467
        %469 = vmatmul.bf16.gmra.mxu0 %v428
        %v470 = vpop.f32.mrf.mxu0
        %v471 = vadd.f32 %v397, %v470
        %v472 = vpop.f32.mrf.mxu0
        %v473 = vadd.f32 %v397, %v472
        %474 = vmatmul.bf16.gmra.mxu0 %v431
        %v475 = vpop.f32.mrf.mxu0
        %v476 = vadd.f32 %v397, %v475
        %v477 = vpop.f32.mrf.mxu0
        %v478 = vadd.f32 %v397, %v477
        %479 = vmatmul.bf16.gmra.mxu0 %v434
        %v480 = vpop.f32.mrf.mxu0
        %v481 = vadd.f32 %v397, %v480
        %v482 = vpop.f32.mrf.mxu0
        %v483 = vadd.f32 %v397, %v482
        %484 = vdwg.mxu0
        %v485 = vpack.c.bf16 %v446, %v446
        %v486 = vpack.c.bf16 %v448, %v448
        %v487 = vpack.c.bf16 %v451, %v451
        %v488 = vpack.c.bf16 %v453, %v453
        %v489 = vpack.c.bf16 %v456, %v456
        %v490 = vpack.c.bf16 %v458, %v458
        %v491 = vpack.c.bf16 %v461, %v461
        %v492 = vpack.c.bf16 %v463, %v463
        %v493 = vpack.c.bf16 %v466, %v466
        %v494 = vpack.c.bf16 %v468, %v468
        %v495 = vpack.c.bf16 %v471, %v471
        %v496 = vpack.c.bf16 %v473, %v473
        %v497 = vpack.c.bf16 %v476, %v476
        %v498 = vpack.c.bf16 %v478, %v478
        %v499 = vpack.c.bf16 %v481, %v481
        %v500 = vpack.c.bf16 %v483, %v483
        %vm501 = vcmask 257024
        %502 = vst.msk [vmem:[#allocation2] sm:$0xf] %vm501, %v485
        %503 = vst.msk [vmem:[#allocation2 + $0x4] sm:$0xf] %vm501, %v486
        %504 = vst.msk [vmem:[#allocation2 + $0x8] sm:$0xf] %vm501, %v487
        %505 = vst.msk [vmem:[#allocation2 + $0xc] sm:$0xf] %vm501, %v488
        %506 = vst.msk [vmem:[#allocation2 + $0x10] sm:$0xf] %vm501, %v489
        %507 = vst.msk [vmem:[#allocation2 + $0x14] sm:$0xf] %vm501, %v490
        %508 = vst.msk [vmem:[#allocation2 + $0x18] sm:$0xf] %vm501, %v491
        %509 = vst.msk [vmem:[#allocation2 + $0x1c] sm:$0xf] %vm501, %v492
        %510 = vst.msk [vmem:[#allocation2 + $0x20] sm:$0xf] %vm501, %v493
        %511 = vst.msk [vmem:[#allocation2 + $0x24] sm:$0xf] %vm501, %v494
        %512 = vst.msk [vmem:[#allocation2 + $0x28] sm:$0xf] %vm501, %v495
        %513 = vst.msk [vmem:[#allocation2 + $0x2c] sm:$0xf] %vm501, %v496
        %514 = vst.msk [vmem:[#allocation2 + $0x30] sm:$0xf] %vm501, %v497
        %515 = vst.msk [vmem:[#allocation2 + $0x34] sm:$0xf] %vm501, %v498
        %516 = vst.msk [vmem:[#allocation2 + $0x38] sm:$0xf] %vm501, %v499
        %517 = vst.msk [vmem:[#allocation2 + $0x3c] sm:$0xf] %vm501, %v500
        %vm518 = vcmask 7168
        %519 = vst.msk [vmem:[#allocation3] sm:$0xff] %vm518, -inf
        %520 = vst.msk [vmem:[#allocation3 + $0x8] sm:$0xff] %vm518, -inf
        %521 = vst.msk [vmem:[#allocation3 + $0x10] sm:$0xff] %vm518, -inf
        %522 = vst.msk [vmem:[#allocation3 + $0x18] sm:$0xff] %vm518, -inf
        %523 = vst.msk [vmem:[#allocation3 + $0x20] sm:$0xff] %vm518, -inf
        %524 = vst.msk [vmem:[#allocation3 + $0x28] sm:$0xff] %vm518, -inf
        %525 = vst.msk [vmem:[#allocation3 + $0x30] sm:$0xff] %vm518, -inf
        %526 = vst.msk [vmem:[#allocation3 + $0x38] sm:$0xff] %vm518, -inf
        %527 = vst.msk [vmem:[#allocation3 + $0x40] sm:$0xff] %vm518, -inf
        %528 = vst.msk [vmem:[#allocation3 + $0x48] sm:$0xff] %vm518, -inf
        %529 = vst.msk [vmem:[#allocation3 + $0x50] sm:$0xff] %vm518, -inf
        %530 = vst.msk [vmem:[#allocation3 + $0x58] sm:$0xff] %vm518, -inf
        %531 = vst.msk [vmem:[#allocation3 + $0x60] sm:$0xff] %vm518, -inf
        %532 = vst.msk [vmem:[#allocation3 + $0x68] sm:$0xff] %vm518, -inf
        %533 = vst.msk [vmem:[#allocation3 + $0x70] sm:$0xff] %vm518, -inf
        %534 = vst.msk [vmem:[#allocation3 + $0x78] sm:$0xff] %vm518, -inf
        %535 = vst.msk [vmem:[#allocation4] sm:$0xff] %vm518, 0.0
        %536 = vst.msk [vmem:[#allocation4 + $0x8] sm:$0xff] %vm518, 0.0
        %537 = vst.msk [vmem:[#allocation4 + $0x10] sm:$0xff] %vm518, 0.0
        %538 = vst.msk [vmem:[#allocation4 + $0x18] sm:$0xff] %vm518, 0.0
        %539 = vst.msk [vmem:[#allocation4 + $0x20] sm:$0xff] %vm518, 0.0
        %540 = vst.msk [vmem:[#allocation4 + $0x28] sm:$0xff] %vm518, 0.0
        %541 = vst.msk [vmem:[#allocation4 + $0x30] sm:$0xff] %vm518, 0.0
        %542 = vst.msk [vmem:[#allocation4 + $0x38] sm:$0xff] %vm518, 0.0
        %543 = vst.msk [vmem:[#allocation4 + $0x40] sm:$0xff] %vm518, 0.0
        %544 = vst.msk [vmem:[#allocation4 + $0x48] sm:$0xff] %vm518, 0.0
        %545 = vst.msk [vmem:[#allocation4 + $0x50] sm:$0xff] %vm518, 0.0
        %546 = vst.msk [vmem:[#allocation4 + $0x58] sm:$0xff] %vm518, 0.0
        %547 = vst.msk [vmem:[#allocation4 + $0x60] sm:$0xff] %vm518, 0.0
        %548 = vst.msk [vmem:[#allocation4 + $0x68] sm:$0xff] %vm518, 0.0
        %549 = vst.msk [vmem:[#allocation4 + $0x70] sm:$0xff] %vm518, 0.0
        %550 = vst.msk [vmem:[#allocation4 + $0x78] sm:$0xff] %vm518, 0.0
        %551 = vst.msk [vmem:[#allocation5] sm:$0xff] %vm411, 0.0
        %552 = vst.msk [vmem:[#allocation5 + $0x8] sm:$0xff] %vm411, 0.0
        %553 = vst.msk [vmem:[#allocation5 + $0x10] sm:$0xff] %vm411, 0.0
        %554 = vst.msk [vmem:[#allocation5 + $0x18] sm:$0xff] %vm411, 0.0
        %555 = vst.msk [vmem:[#allocation5 + $0x20] sm:$0xff] %vm411, 0.0
        %556 = vst.msk [vmem:[#allocation5 + $0x28] sm:$0xff] %vm411, 0.0
        %557 = vst.msk [vmem:[#allocation5 + $0x30] sm:$0xff] %vm411, 0.0
        %558 = vst.msk [vmem:[#allocation5 + $0x38] sm:$0xff] %vm411, 0.0
        %559 = vst.msk [vmem:[#allocation5 + $0x40] sm:$0xff] %vm411, 0.0
        %560 = vst.msk [vmem:[#allocation5 + $0x48] sm:$0xff] %vm411, 0.0
        %561 = vst.msk [vmem:[#allocation5 + $0x50] sm:$0xff] %vm411, 0.0
        %562 = vst.msk [vmem:[#allocation5 + $0x58] sm:$0xff] %vm411, 0.0
        %563 = vst.msk [vmem:[#allocation5 + $0x60] sm:$0xff] %vm411, 0.0
        %564 = vst.msk [vmem:[#allocation5 + $0x68] sm:$0xff] %vm411, 0.0
        %565 = vst.msk [vmem:[#allocation5 + $0x70] sm:$0xff] %vm411, 0.0
        %566 = vst.msk [vmem:[#allocation5 + $0x78] sm:$0xff] %vm411, 0.0
      $region52: #{tpu_custom_call.1} parent=47 // pred_fallthru
        _
      %v567 = vld [vmem:[%s350] sm:$0xff]
      %v568 = vld [vmem:[%s350 + $0x8] sm:$0xff]
      %v569 = vld [vmem:[%s350 + $0x10] sm:$0xff]
      %v570 = vld [vmem:[%s350 + $0x18] sm:$0xff]
      %v571 = vld [vmem:[%s350 + $0x20] sm:$0xff]
      %v572 = vld [vmem:[%s350 + $0x28] sm:$0xff]
      %v573 = vld [vmem:[%s350 + $0x30] sm:$0xff]
      %v574 = vld [vmem:[%s350 + $0x38] sm:$0xff]
      %v575 = vld [vmem:[%s350 + $0x40] sm:$0xff]
      %v576 = vld [vmem:[%s350 + $0x48] sm:$0xff]
      %v577 = vld [vmem:[%s350 + $0x50] sm:$0xff]
      %v578 = vld [vmem:[%s350 + $0x58] sm:$0xff]
      %v579 = vld [vmem:[%s350 + $0x60] sm:$0xff]
      %v580 = vld [vmem:[%s350 + $0x68] sm:$0xff]
      %v581 = vld [vmem:[%s350 + $0x70] sm:$0xff]
      %v582 = vld [vmem:[%s350 + $0x78] sm:$0xff]
      %v583 = vpack.c.bf16 %v568, %v567
      %v584 = vpack.c.bf16 %v570, %v569
      %v585 = vpack.c.bf16 %v572, %v571
      %v586 = vpack.c.bf16 %v574, %v573
      %v587 = vpack.c.bf16 %v576, %v575
      %v588 = vpack.c.bf16 %v578, %v577
      %v589 = vpack.c.bf16 %v580, %v579
      %v590 = vpack.c.bf16 %v582, %v581
      %v591 = vld [vmem:[#allocation2] sm:$0xf]
      %v592 = vld [vmem:[#allocation2 + $0x4] sm:$0xf]
      %v593 = vld [vmem:[#allocation2 + $0x8] sm:$0xf]
      %v594 = vld [vmem:[#allocation2 + $0xc] sm:$0xf]
      %v595 = vld [vmem:[#allocation2 + $0x10] sm:$0xf]
      %v596 = vld [vmem:[#allocation2 + $0x14] sm:$0xf]
      %v597 = vld [vmem:[#allocation2 + $0x18] sm:$0xf]
      %v598 = vld [vmem:[#allocation2 + $0x1c] sm:$0xf]
      %v599 = vld [vmem:[#allocation2 + $0x20] sm:$0xf]
      %v600 = vld [vmem:[#allocation2 + $0x24] sm:$0xf]
      %v601 = vld [vmem:[#allocation2 + $0x28] sm:$0xf]
      %v602 = vld [vmem:[#allocation2 + $0x2c] sm:$0xf]
      %v603 = vld [vmem:[#allocation2 + $0x30] sm:$0xf]
      %v604 = vld [vmem:[#allocation2 + $0x34] sm:$0xf]
      %v605 = vld [vmem:[#allocation2 + $0x38] sm:$0xf]
      %v606 = vld [vmem:[#allocation2 + $0x3c] sm:$0xf]
      %v623 = vunpack.c.l.b16 %v591
      %v624 = vunpack.c.l.b16 %v592
      %v625 = vunpack.c.l.b16 %v593
      %v626 = vunpack.c.l.b16 %v594
      %v627 = vunpack.c.l.b16 %v595
      %v628 = vunpack.c.l.b16 %v596
      %v629 = vunpack.c.l.b16 %v597
      %v630 = vunpack.c.l.b16 %v598
      %v631 = vunpack.c.l.b16 %v599
      %v632 = vunpack.c.l.b16 %v600
      %v633 = vunpack.c.l.b16 %v601
      %v634 = vunpack.c.l.b16 %v602
      %v635 = vunpack.c.l.b16 %v603
      %v636 = vunpack.c.l.b16 %v604
      %v637 = vunpack.c.l.b16 %v605
      %v638 = vunpack.c.l.b16 %v606
      %v639 = vpack.c.b16 %v624, %v623
      %v640 = vpack.c.b16 %v626, %v625
      %v641 = vpack.c.b16 %v628, %v627
      %v642 = vpack.c.b16 %v630, %v629
      %v643 = vpack.c.b16 %v632, %v631
      %v644 = vpack.c.b16 %v634, %v633
      %v645 = vpack.c.b16 %v636, %v635
      %v646 = vpack.c.b16 %v638, %v637
      %vm647 = vcmask 261120
      %v649 = vsel %vm647, %v639, 0
      %v652 = vsel %vm647, %v640, 0
      %v655 = vsel %vm647, %v641, 0
      %v658 = vsel %vm647, %v642, 0
      %v661 = vsel %vm647, %v643, 0
      %v664 = vsel %vm647, %v644, 0
      %v667 = vsel %vm647, %v645, 0
      %v670 = vsel %vm647, %v646, 0
      %v673 = vsel %vm647, %v583, 0
      %v676 = vsel %vm647, %v584, 0
      %v679 = vsel %vm647, %v585, 0
      %v682 = vsel %vm647, %v586, 0
      %v685 = vsel %vm647, %v587, 0
      %v688 = vsel %vm647, %v588, 0
      %v691 = vsel %vm647, %v589, 0
      %v694 = vsel %vm647, %v590, 0
      %696 = vmatpush.bf16.xpose.msra.mxu0 %v694
      %697 = vmatpush.bf16.xpose.msra.mxu0 %v691
      %698 = vmatpush.bf16.xpose.msra.mxu0 %v688
      %699 = vmatpush.bf16.xpose.msra.mxu0 %v685
      %700 = vmatpush.bf16.xpose.msra.mxu0 %v682
      %701 = vmatpush.bf16.xpose.msra.mxu0 %v679
      %702 = vmatpush.bf16.xpose.msra.mxu0 %v676
      %703 = vmatpush.bf16.xpose.msra.mxu0 %v673
      %704 = vmatmul.bf16.gmra.mxu0 %v649
      %v705 = vpop.f32.mrf.mxu0
      %v706 = vadd.f32 0.0, %v705
      %v707 = vpop.f32.mrf.mxu0
      %v708 = vadd.f32 0.0, %v707
      %709 = vmatmul.bf16.gmra.mxu0 %v652
      %v710 = vpop.f32.mrf.mxu0
      %v711 = vadd.f32 0.0, %v710
      %v712 = vpop.f32.mrf.mxu0
      %v713 = vadd.f32 0.0, %v712
      %714 = vmatmul.bf16.gmra.mxu0 %v655
      %v715 = vpop.f32.mrf.mxu0
      %v716 = vadd.f32 0.0, %v715
      %v717 = vpop.f32.mrf.mxu0
      %v718 = vadd.f32 0.0, %v717
      %719 = vmatmul.bf16.gmra.mxu0 %v658
      %v720 = vpop.f32.mrf.mxu0
      %v721 = vadd.f32 0.0, %v720
      %v722 = vpop.f32.mrf.mxu0
      %v723 = vadd.f32 0.0, %v722
      %724 = vmatmul.bf16.gmra.mxu0 %v661
      %v725 = vpop.f32.mrf.mxu0
      %v726 = vadd.f32 0.0, %v725
      %v727 = vpop.f32.mrf.mxu0
      %v728 = vadd.f32 0.0, %v727
      %729 = vmatmul.bf16.gmra.mxu0 %v664
      %v730 = vpop.f32.mrf.mxu0
      %v731 = vadd.f32 0.0, %v730
      %v732 = vpop.f32.mrf.mxu0
      %v733 = vadd.f32 0.0, %v732
      %734 = vmatmul.bf16.gmra.mxu0 %v667
      %v735 = vpop.f32.mrf.mxu0
      %v736 = vadd.f32 0.0, %v735
      %v737 = vpop.f32.mrf.mxu0
      %v738 = vadd.f32 0.0, %v737
      %739 = vmatmul.bf16.gmra.mxu0 %v670
      %v740 = vpop.f32.mrf.mxu0
      %v741 = vadd.f32 0.0, %v740
      %v742 = vpop.f32.mrf.mxu0
      %v743 = vadd.f32 0.0, %v742
      %744 = vdwg.mxu0
      %v745 = vld [vmem:[#allocation3] sm:$0xff]
      %v746 = vld [vmem:[#allocation3 + $0x8] sm:$0xff]
      %v747 = vld [vmem:[#allocation3 + $0x10] sm:$0xff]
      %v748 = vld [vmem:[#allocation3 + $0x18] sm:$0xff]
      %v749 = vld [vmem:[#allocation3 + $0x20] sm:$0xff]
      %v750 = vld [vmem:[#allocation3 + $0x28] sm:$0xff]
      %v751 = vld [vmem:[#allocation3 + $0x30] sm:$0xff]
      %v752 = vld [vmem:[#allocation3 + $0x38] sm:$0xff]
      %v753 = vld [vmem:[#allocation3 + $0x40] sm:$0xff]
      %v754 = vld [vmem:[#allocation3 + $0x48] sm:$0xff]
      %v755 = vld [vmem:[#allocation3 + $0x50] sm:$0xff]
      %v756 = vld [vmem:[#allocation3 + $0x58] sm:$0xff]
      %v757 = vld [vmem:[#allocation3 + $0x60] sm:$0xff]
      %v758 = vld [vmem:[#allocation3 + $0x68] sm:$0xff]
      %v759 = vld [vmem:[#allocation3 + $0x70] sm:$0xff]
      %v760 = vld [vmem:[#allocation3 + $0x78] sm:$0xff]
      %761 = vmax.xlane.f32.xlu0 %v706
      %v762 = vpop.xlane.xlu0 %761
      %763 = vmax.xlane.f32.xlu0 %v708
      %v764 = vpop.xlane.xlu0 %763
      %765 = vmax.xlane.f32.xlu0 %v711
      %v766 = vpop.xlane.xlu0 %765
      %767 = vmax.xlane.f32.xlu0 %v713
      %v768 = vpop.xlane.xlu0 %767
      %769 = vmax.xlane.f32.xlu0 %v716
      %v770 = vpop.xlane.xlu0 %769
      %771 = vmax.xlane.f32.xlu0 %v718
      %v772 = vpop.xlane.xlu0 %771
      %773 = vmax.xlane.f32.xlu0 %v721
      %v774 = vpop.xlane.xlu0 %773
      %775 = vmax.xlane.f32.xlu0 %v723
      %v776 = vpop.xlane.xlu0 %775
      %777 = vmax.xlane.f32.xlu0 %v726
      %v778 = vpop.xlane.xlu0 %777
      %779 = vmax.xlane.f32.xlu0 %v728
      %v780 = vpop.xlane.xlu0 %779
      %781 = vmax.xlane.f32.xlu0 %v731
      %v782 = vpop.xlane.xlu0 %781
      %783 = vmax.xlane.f32.xlu0 %v733
      %v784 = vpop.xlane.xlu0 %783
      %785 = vmax.xlane.f32.xlu0 %v736
      %v786 = vpop.xlane.xlu0 %785
      %787 = vmax.xlane.f32.xlu0 %v738
      %v788 = vpop.xlane.xlu0 %787
      %789 = vmax.xlane.f32.xlu0 %v741
      %v790 = vpop.xlane.xlu0 %789
      %791 = vmax.xlane.f32.xlu0 %v743
      %v792 = vpop.xlane.xlu0 %791
      %v793 = vmax.f32 %v745, %v762
      %v794 = vmax.f32 %v746, %v764
      %v795 = vmax.f32 %v747, %v766
      %v796 = vmax.f32 %v748, %v768
      %v797 = vmax.f32 %v749, %v770
      %v798 = vmax.f32 %v750, %v772
      %v799 = vmax.f32 %v751, %v774
      %v800 = vmax.f32 %v752, %v776
      %v801 = vmax.f32 %v753, %v778
      %v802 = vmax.f32 %v754, %v780
      %v803 = vmax.f32 %v755, %v782
      %v804 = vmax.f32 %v756, %v784
      %v805 = vmax.f32 %v757, %v786
      %v806 = vmax.f32 %v758, %v788
      %v807 = vmax.f32 %v759, %v790
      %v808 = vmax.f32 %v760, %v792
      %v809 = vsub.f32 %v745, %v793
      %v810 = vsub.f32 %v746, %v794
      %v811 = vsub.f32 %v747, %v795
      %v812 = vsub.f32 %v748, %v796
      %v813 = vsub.f32 %v749, %v797
      %v814 = vsub.f32 %v750, %v798
      %v815 = vsub.f32 %v751, %v799
      %v816 = vsub.f32 %v752, %v800
      %v817 = vsub.f32 %v753, %v801
      %v818 = vsub.f32 %v754, %v802
      %v819 = vsub.f32 %v755, %v803
      %v820 = vsub.f32 %v756, %v804
      %v821 = vsub.f32 %v757, %v805
      %v822 = vsub.f32 %v758, %v806
      %v823 = vsub.f32 %v759, %v807
      %v824 = vsub.f32 %v760, %v808
      %v825 = vmul.f32 %v809, 1.442695
      %v826 = vpow.pop %v825
      %v827 = vmul.f32 %v810, 1.442695
      %v828 = vpow.pop %v827
      %v829 = vmul.f32 %v811, 1.442695
      %v830 = vpow.pop %v829
      %v831 = vmul.f32 %v812, 1.442695
      %v832 = vpow.pop %v831
      %v833 = vmul.f32 %v813, 1.442695
      %v834 = vpow.pop %v833
      %v835 = vmul.f32 %v814, 1.442695
      %v836 = vpow.pop %v835
      %v837 = vmul.f32 %v815, 1.442695
      %v838 = vpow.pop %v837
      %v839 = vmul.f32 %v816, 1.442695
      %v840 = vpow.pop %v839
      %v841 = vmul.f32 %v817, 1.442695
      %v842 = vpow.pop %v841
      %v843 = vmul.f32 %v818, 1.442695
      %v844 = vpow.pop %v843
      %v845 = vmul.f32 %v819, 1.442695
      %v846 = vpow.pop %v845
      %v847 = vmul.f32 %v820, 1.442695
      %v848 = vpow.pop %v847
      %v849 = vmul.f32 %v821, 1.442695
      %v850 = vpow.pop %v849
      %v851 = vmul.f32 %v822, 1.442695
      %v852 = vpow.pop %v851
      %v853 = vmul.f32 %v823, 1.442695
      %v854 = vpow.pop %v853
      %v855 = vmul.f32 %v824, 1.442695
      %v856 = vpow.pop %v855
      %858 = vset.pattern.permute.xlu0 0
      %859 = vperm.xlu0 %858, %v793
      %v860 = vpop.permute.xlu0 %859
      %863 = vset.pattern.permute.xlu0 0
      %864 = vperm.xlu0 %863, %v794
      %v865 = vpop.permute.xlu0 %864
      %868 = vset.pattern.permute.xlu0 0
      %869 = vperm.xlu0 %868, %v795
      %v870 = vpop.permute.xlu0 %869
      %873 = vset.pattern.permute.xlu0 0
      %874 = vperm.xlu0 %873, %v796
      %v875 = vpop.permute.xlu0 %874
      %878 = vset.pattern.permute.xlu0 0
      %879 = vperm.xlu0 %878, %v797
      %v880 = vpop.permute.xlu0 %879
      %883 = vset.pattern.permute.xlu0 0
      %884 = vperm.xlu0 %883, %v798
      %v885 = vpop.permute.xlu0 %884
      %888 = vset.pattern.permute.xlu0 0
      %889 = vperm.xlu0 %888, %v799
      %v890 = vpop.permute.xlu0 %889
      %893 = vset.pattern.permute.xlu0 0
      %894 = vperm.xlu0 %893, %v800
      %v895 = vpop.permute.xlu0 %894
      %898 = vset.pattern.permute.xlu0 0
      %899 = vperm.xlu0 %898, %v801
      %v900 = vpop.permute.xlu0 %899
      %903 = vset.pattern.permute.xlu0 0
      %904 = vperm.xlu0 %903, %v802
      %v905 = vpop.permute.xlu0 %904
      %908 = vset.pattern.permute.xlu0 0
      %909 = vperm.xlu0 %908, %v803
      %v910 = vpop.permute.xlu0 %909
      %913 = vset.pattern.permute.xlu0 0
      %914 = vperm.xlu0 %913, %v804
      %v915 = vpop.permute.xlu0 %914
      %918 = vset.pattern.permute.xlu0 0
      %919 = vperm.xlu0 %918, %v805
      %v920 = vpop.permute.xlu0 %919
      %923 = vset.pattern.permute.xlu0 0
      %924 = vperm.xlu0 %923, %v806
      %v925 = vpop.permute.xlu0 %924
      %928 = vset.pattern.permute.xlu0 0
      %929 = vperm.xlu0 %928, %v807
      %v930 = vpop.permute.xlu0 %929
      %933 = vset.pattern.permute.xlu0 0
      %934 = vperm.xlu0 %933, %v808
      %v935 = vpop.permute.xlu0 %934
      %v937 = vsub.f32 %v706, %v860
      %v938 = vsub.f32 %v708, %v865
      %v939 = vsub.f32 %v711, %v870
      %v940 = vsub.f32 %v713, %v875
      %v941 = vsub.f32 %v716, %v880
      %v942 = vsub.f32 %v718, %v885
      %v943 = vsub.f32 %v721, %v890
      %v944 = vsub.f32 %v723, %v895
      %v945 = vsub.f32 %v726, %v900
      %v946 = vsub.f32 %v728, %v905
      %v947 = vsub.f32 %v731, %v910
      %v948 = vsub.f32 %v733, %v915
      %v949 = vsub.f32 %v736, %v920
      %v950 = vsub.f32 %v738, %v925
      %v951 = vsub.f32 %v741, %v930
      %v952 = vsub.f32 %v743, %v935
      %v953 = vmul.f32 %v937, 1.442695
      %v954 = vpow.pop %v953
      %v955 = vmul.f32 %v938, 1.442695
      %v956 = vpow.pop %v955
      %v957 = vmul.f32 %v939, 1.442695
      %v958 = vpow.pop %v957
      %v959 = vmul.f32 %v940, 1.442695
      %v960 = vpow.pop %v959
      %v961 = vmul.f32 %v941, 1.442695
      %v962 = vpow.pop %v961
      %v963 = vmul.f32 %v942, 1.442695
      %v964 = vpow.pop %v963
      %v965 = vmul.f32 %v943, 1.442695
      %v966 = vpow.pop %v965
      %v967 = vmul.f32 %v944, 1.442695
      %v968 = vpow.pop %v967
      %v969 = vmul.f32 %v945, 1.442695
      %v970 = vpow.pop %v969
      %v971 = vmul.f32 %v946, 1.442695
      %v972 = vpow.pop %v971
      %v973 = vmul.f32 %v947, 1.442695
      %v974 = vpow.pop %v973
      %v975 = vmul.f32 %v948, 1.442695
      %v976 = vpow.pop %v975
      %v977 = vmul.f32 %v949, 1.442695
      %v978 = vpow.pop %v977
      %v979 = vmul.f32 %v950, 1.442695
      %v980 = vpow.pop %v979
      %v981 = vmul.f32 %v951, 1.442695
      %v982 = vpow.pop %v981
      %v983 = vmul.f32 %v952, 1.442695
      %v984 = vpow.pop %v983
      %v985 = vld [vmem:[#allocation4] sm:$0xff]
      %v986 = vld [vmem:[#allocation4 + $0x8] sm:$0xff]
      %v987 = vld [vmem:[#allocation4 + $0x10] sm:$0xff]
      %v988 = vld [vmem:[#allocation4 + $0x18] sm:$0xff]
      %v989 = vld [vmem:[#allocation4 + $0x20] sm:$0xff]
      %v990 = vld [vmem:[#allocation4 + $0x28] sm:$0xff]
      %v991 = vld [vmem:[#allocation4 + $0x30] sm:$0xff]
      %v992 = vld [vmem:[#allocation4 + $0x38] sm:$0xff]
      %v993 = vld [vmem:[#allocation4 + $0x40] sm:$0xff]
      %v994 = vld [vmem:[#allocation4 + $0x48] sm:$0xff]
      %v995 = vld [vmem:[#allocation4 + $0x50] sm:$0xff]
      %v996 = vld [vmem:[#allocation4 + $0x58] sm:$0xff]
      %v997 = vld [vmem:[#allocation4 + $0x60] sm:$0xff]
      %v998 = vld [vmem:[#allocation4 + $0x68] sm:$0xff]
      %v999 = vld [vmem:[#allocation4 + $0x70] sm:$0xff]
      %v1000 = vld [vmem:[#allocation4 + $0x78] sm:$0xff]
      %v1001 = vmul.f32 %v826, %v985
      %v1002 = vmul.f32 %v828, %v986
      %v1003 = vmul.f32 %v830, %v987
      %v1004 = vmul.f32 %v832, %v988
      %v1005 = vmul.f32 %v834, %v989
      %v1006 = vmul.f32 %v836, %v990
      %v1007 = vmul.f32 %v838, %v991
      %v1008 = vmul.f32 %v840, %v992
      %v1009 = vmul.f32 %v842, %v993
      %v1010 = vmul.f32 %v844, %v994
      %v1011 = vmul.f32 %v846, %v995
      %v1012 = vmul.f32 %v848, %v996
      %v1013 = vmul.f32 %v850, %v997
      %v1014 = vmul.f32 %v852, %v998
      %v1015 = vmul.f32 %v854, %v999
      %v1016 = vmul.f32 %v856, %v1000
      %1017 = vadd.xlane.f32.xlu0 %v954
      %v1018 = vpop.xlane.xlu0 %1017
      %1019 = vadd.xlane.f32.xlu0 %v956
      %v1020 = vpop.xlane.xlu0 %1019
      %1021 = vadd.xlane.f32.xlu0 %v958
      %v1022 = vpop.xlane.xlu0 %1021
      %1023 = vadd.xlane.f32.xlu0 %v960
      %v1024 = vpop.xlane.xlu0 %1023
      %1025 = vadd.xlane.f32.xlu0 %v962
      %v1026 = vpop.xlane.xlu0 %1025
      %1027 = vadd.xlane.f32.xlu0 %v964
      %v1028 = vpop.xlane.xlu0 %1027
      %1029 = vadd.xlane.f32.xlu0 %v966
      %v1030 = vpop.xlane.xlu0 %1029
      %1031 = vadd.xlane.f32.xlu0 %v968
      %v1032 = vpop.xlane.xlu0 %1031
      %1033 = vadd.xlane.f32.xlu0 %v970
      %v1034 = vpop.xlane.xlu0 %1033
      %1035 = vadd.xlane.f32.xlu0 %v972
      %v1036 = vpop.xlane.xlu0 %1035
      %1037 = vadd.xlane.f32.xlu0 %v974
      %v1038 = vpop.xlane.xlu0 %1037
      %1039 = vadd.xlane.f32.xlu0 %v976
      %v1040 = vpop.xlane.xlu0 %1039
      %1041 = vadd.xlane.f32.xlu0 %v978
      %v1042 = vpop.xlane.xlu0 %1041
      %1043 = vadd.xlane.f32.xlu0 %v980
      %v1044 = vpop.xlane.xlu0 %1043
      %1045 = vadd.xlane.f32.xlu0 %v982
      %v1046 = vpop.xlane.xlu0 %1045
      %1047 = vadd.xlane.f32.xlu0 %v984
      %v1048 = vpop.xlane.xlu0 %1047
      %v1049 = vadd.f32 %v1001, %v1018
      %v1050 = vadd.f32 %v1002, %v1020
      %v1051 = vadd.f32 %v1003, %v1022
      %v1052 = vadd.f32 %v1004, %v1024
      %v1053 = vadd.f32 %v1005, %v1026
      %v1054 = vadd.f32 %v1006, %v1028
      %v1055 = vadd.f32 %v1007, %v1030
      %v1056 = vadd.f32 %v1008, %v1032
      %v1057 = vadd.f32 %v1009, %v1034
      %v1058 = vadd.f32 %v1010, %v1036
      %v1059 = vadd.f32 %v1011, %v1038
      %v1060 = vadd.f32 %v1012, %v1040
      %v1061 = vadd.f32 %v1013, %v1042
      %v1062 = vadd.f32 %v1014, %v1044
      %v1063 = vadd.f32 %v1015, %v1046
      %v1064 = vadd.f32 %v1016, %v1048
      %vm1065 = vcmask 7168
      %1066 = vst.msk [vmem:[#allocation4] sm:$0xff] %vm1065, %v1049
      %1067 = vst.msk [vmem:[#allocation4 + $0x8] sm:$0xff] %vm1065, %v1050
      %1068 = vst.msk [vmem:[#allocation4 + $0x10] sm:$0xff] %vm1065, %v1051
      %1069 = vst.msk [vmem:[#allocation4 + $0x18] sm:$0xff] %vm1065, %v1052
      %1070 = vst.msk [vmem:[#allocation4 + $0x20] sm:$0xff] %vm1065, %v1053
      %1071 = vst.msk [vmem:[#allocation4 + $0x28] sm:$0xff] %vm1065, %v1054
      %1072 = vst.msk [vmem:[#allocation4 + $0x30] sm:$0xff] %vm1065, %v1055
      %1073 = vst.msk [vmem:[#allocation4 + $0x38] sm:$0xff] %vm1065, %v1056
      %1074 = vst.msk [vmem:[#allocation4 + $0x40] sm:$0xff] %vm1065, %v1057
      %1075 = vst.msk [vmem:[#allocation4 + $0x48] sm:$0xff] %vm1065, %v1058
      %1076 = vst.msk [vmem:[#allocation4 + $0x50] sm:$0xff] %vm1065, %v1059
      %1077 = vst.msk [vmem:[#allocation4 + $0x58] sm:$0xff] %vm1065, %v1060
      %1078 = vst.msk [vmem:[#allocation4 + $0x60] sm:$0xff] %vm1065, %v1061
      %1079 = vst.msk [vmem:[#allocation4 + $0x68] sm:$0xff] %vm1065, %v1062
      %1080 = vst.msk [vmem:[#allocation4 + $0x70] sm:$0xff] %vm1065, %v1063
      %1081 = vst.msk [vmem:[#allocation4 + $0x78] sm:$0xff] %vm1065, %v1064
      %1082 = vst.msk [vmem:[#allocation3] sm:$0xff] %vm1065, %v793
      %1083 = vst.msk [vmem:[#allocation3 + $0x8] sm:$0xff] %vm1065, %v794
      %1084 = vst.msk [vmem:[#allocation3 + $0x10] sm:$0xff] %vm1065, %v795
      %1085 = vst.msk [vmem:[#allocation3 + $0x18] sm:$0xff] %vm1065, %v796
      %1086 = vst.msk [vmem:[#allocation3 + $0x20] sm:$0xff] %vm1065, %v797
      %1087 = vst.msk [vmem:[#allocation3 + $0x28] sm:$0xff] %vm1065, %v798
      %1088 = vst.msk [vmem:[#allocation3 + $0x30] sm:$0xff] %vm1065, %v799
      %1089 = vst.msk [vmem:[#allocation3 + $0x38] sm:$0xff] %vm1065, %v800
      %1090 = vst.msk [vmem:[#allocation3 + $0x40] sm:$0xff] %vm1065, %v801
      %1091 = vst.msk [vmem:[#allocation3 + $0x48] sm:$0xff] %vm1065, %v802
      %1092 = vst.msk [vmem:[#allocation3 + $0x50] sm:$0xff] %vm1065, %v803
      %1093 = vst.msk [vmem:[#allocation3 + $0x58] sm:$0xff] %vm1065, %v804
      %1094 = vst.msk [vmem:[#allocation3 + $0x60] sm:$0xff] %vm1065, %v805
      %1095 = vst.msk [vmem:[#allocation3 + $0x68] sm:$0xff] %vm1065, %v806
      %1096 = vst.msk [vmem:[#allocation3 + $0x70] sm:$0xff] %vm1065, %v807
      %1097 = vst.msk [vmem:[#allocation3 + $0x78] sm:$0xff] %vm1065, %v808
      %v1098 = vld [vmem:[%s4] sm:$0xf]
      %v1099 = vld [vmem:[%s4 + $0x4] sm:$0xf]
      %v1100 = vld [vmem:[%s4 + $0x8] sm:$0xf]
      %v1101 = vld [vmem:[%s4 + $0xc] sm:$0xf]
      %v1102 = vld [vmem:[%s5] sm:$0x1]
      %v1104 = vperm.slane %v1102, 0
      %v1110 = vunpack.c.l.b16 %v1098
      %v1111 = vunpack.c.l.b16 %v1099
      %v1112 = vunpack.c.l.b16 %v1100
      %v1113 = vunpack.c.l.b16 %v1101
      %v1114 = vpack.c.b16 %v1111, %v1110
      %v1115 = vpack.c.b16 %v1113, %v1112
      %1118 = vmatpush.bf16.msra.mxu0 0
      %1119 = vmatpush.bf16.msra.mxu0 0
      %1120 = vmatpush.bf16.msra.mxu0 0
      %1121 = vmatpush.bf16.msra.mxu0 0
      %1122 = vmatpush.bf16.msra.mxu0 0
      %1123 = vmatpush.bf16.msra.mxu0 0
      %1124 = vmatpush.bf16.msra.mxu0 %v1115
      %1125 = vmatpush.bf16.msra.mxu0 %v1114
      %1126 = vmatmul.bf16.gmra.mxu0 %v673
      %v1127 = vpop.f32.mrf.mxu0
      %v1128 = vadd.f32 %v1104, %v1127
      %v1129 = vpop.f32.mrf.mxu0
      %v1130 = vadd.f32 %v1104, %v1129
      %1131 = vmatmul.bf16.gmra.mxu0 %v676
      %v1132 = vpop.f32.mrf.mxu0
      %v1133 = vadd.f32 %v1104, %v1132
      %v1134 = vpop.f32.mrf.mxu0
      %v1135 = vadd.f32 %v1104, %v1134
      %1136 = vmatmul.bf16.gmra.mxu0 %v679
      %v1137 = vpop.f32.mrf.mxu0
      %v1138 = vadd.f32 %v1104, %v1137
      %v1139 = vpop.f32.mrf.mxu0
      %v1140 = vadd.f32 %v1104, %v1139
      %1141 = vmatmul.bf16.gmra.mxu0 %v682
      %v1142 = vpop.f32.mrf.mxu0
      %v1143 = vadd.f32 %v1104, %v1142
      %v1144 = vpop.f32.mrf.mxu0
      %v1145 = vadd.f32 %v1104, %v1144
      %1146 = vmatmul.bf16.gmra.mxu0 %v685
      %v1147 = vpop.f32.mrf.mxu0
      %v1148 = vadd.f32 %v1104, %v1147
      %v1149 = vpop.f32.mrf.mxu0
      %v1150 = vadd.f32 %v1104, %v1149
      %1151 = vmatmul.bf16.gmra.mxu0 %v688
      %v1152 = vpop.f32.mrf.mxu0
      %v1153 = vadd.f32 %v1104, %v1152
      %v1154 = vpop.f32.mrf.mxu0
      %v1155 = vadd.f32 %v1104, %v1154
      %1156 = vmatmul.bf16.gmra.mxu0 %v691
      %v1157 = vpop.f32.mrf.mxu0
      %v1158 = vadd.f32 %v1104, %v1157
      %v1159 = vpop.f32.mrf.mxu0
      %v1160 = vadd.f32 %v1104, %v1159
      %1161 = vmatmul.bf16.gmra.mxu0 %v694
      %v1162 = vpop.f32.mrf.mxu0
      %v1163 = vadd.f32 %v1104, %v1162
      %v1164 = vpop.f32.mrf.mxu0
      %v1165 = vadd.f32 %v1104, %v1164
      %1166 = vdwg.mxu0
      %v1167 = vld [vmem:[#allocation5] sm:$0xff]
      %v1168 = vld [vmem:[#allocation5 + $0x8] sm:$0xff]
      %v1169 = vld [vmem:[#allocation5 + $0x10] sm:$0xff]
      %v1170 = vld [vmem:[#allocation5 + $0x18] sm:$0xff]
      %v1171 = vld [vmem:[#allocation5 + $0x20] sm:$0xff]
      %v1172 = vld [vmem:[#allocation5 + $0x28] sm:$0xff]
      %v1173 = vld [vmem:[#allocation5 + $0x30] sm:$0xff]
      %v1174 = vld [vmem:[#allocation5 + $0x38] sm:$0xff]
      %v1175 = vld [vmem:[#allocation5 + $0x40] sm:$0xff]
      %v1176 = vld [vmem:[#allocation5 + $0x48] sm:$0xff]
      %v1177 = vld [vmem:[#allocation5 + $0x50] sm:$0xff]
      %v1178 = vld [vmem:[#allocation5 + $0x58] sm:$0xff]
      %v1179 = vld [vmem:[#allocation5 + $0x60] sm:$0xff]
      %v1180 = vld [vmem:[#allocation5 + $0x68] sm:$0xff]
      %v1181 = vld [vmem:[#allocation5 + $0x70] sm:$0xff]
      %v1182 = vld [vmem:[#allocation5 + $0x78] sm:$0xff]
      %1184 = vset.pattern.permute.xlu0 0
      %1185 = vperm.xlu0 %1184, %v826
      %v1186 = vpop.permute.xlu0 %1185
      %1189 = vset.pattern.permute.xlu0 0
      %1190 = vperm.xlu0 %1189, %v828
      %v1191 = vpop.permute.xlu0 %1190
      %1194 = vset.pattern.permute.xlu0 0
      %1195 = vperm.xlu0 %1194, %v830
      %v1196 = vpop.permute.xlu0 %1195
      %1199 = vset.pattern.permute.xlu0 0
      %1200 = vperm.xlu0 %1199, %v832
      %v1201 = vpop.permute.xlu0 %1200
      %1204 = vset.pattern.permute.xlu0 0
      %1205 = vperm.xlu0 %1204, %v834
      %v1206 = vpop.permute.xlu0 %1205
      %1209 = vset.pattern.permute.xlu0 0
      %1210 = vperm.xlu0 %1209, %v836
      %v1211 = vpop.permute.xlu0 %1210
      %1214 = vset.pattern.permute.xlu0 0
      %1215 = vperm.xlu0 %1214, %v838
      %v1216 = vpop.permute.xlu0 %1215
      %1219 = vset.pattern.permute.xlu0 0
      %1220 = vperm.xlu0 %1219, %v840
      %v1221 = vpop.permute.xlu0 %1220
      %1224 = vset.pattern.permute.xlu0 0
      %1225 = vperm.xlu0 %1224, %v842
      %v1226 = vpop.permute.xlu0 %1225
      %1229 = vset.pattern.permute.xlu0 0
      %1230 = vperm.xlu0 %1229, %v844
      %v1231 = vpop.permute.xlu0 %1230
      %1234 = vset.pattern.permute.xlu0 0
      %1235 = vperm.xlu0 %1234, %v846
      %v1236 = vpop.permute.xlu0 %1235
      %1239 = vset.pattern.permute.xlu0 0
      %1240 = vperm.xlu0 %1239, %v848
      %v1241 = vpop.permute.xlu0 %1240
      %1244 = vset.pattern.permute.xlu0 0
      %1245 = vperm.xlu0 %1244, %v850
      %v1246 = vpop.permute.xlu0 %1245
      %1249 = vset.pattern.permute.xlu0 0
      %1250 = vperm.xlu0 %1249, %v852
      %v1251 = vpop.permute.xlu0 %1250
      %1254 = vset.pattern.permute.xlu0 0
      %1255 = vperm.xlu0 %1254, %v854
      %v1256 = vpop.permute.xlu0 %1255
      %1259 = vset.pattern.permute.xlu0 0
      %1260 = vperm.xlu0 %1259, %v856
      %v1261 = vpop.permute.xlu0 %1260
      %v1263 = vmul.f32 %v1186, %v1167
      %v1264 = vmul.f32 %v1191, %v1168
      %v1265 = vmul.f32 %v1196, %v1169
      %v1266 = vmul.f32 %v1201, %v1170
      %v1267 = vmul.f32 %v1206, %v1171
      %v1268 = vmul.f32 %v1211, %v1172
      %v1269 = vmul.f32 %v1216, %v1173
      %v1270 = vmul.f32 %v1221, %v1174
      %v1271 = vmul.f32 %v1226, %v1175
      %v1272 = vmul.f32 %v1231, %v1176
      %v1273 = vmul.f32 %v1236, %v1177
      %v1274 = vmul.f32 %v1241, %v1178
      %v1275 = vmul.f32 %v1246, %v1179
      %v1276 = vmul.f32 %v1251, %v1180
      %v1277 = vmul.f32 %v1256, %v1181
      %v1278 = vmul.f32 %v1261, %v1182
      %v1279 = vpack.c.bf16 %v956, %v954
      %v1280 = vpack.c.bf16 %v960, %v958
      %v1281 = vpack.c.bf16 %v964, %v962
      %v1282 = vpack.c.bf16 %v968, %v966
      %v1283 = vpack.c.bf16 %v972, %v970
      %v1284 = vpack.c.bf16 %v976, %v974
      %v1285 = vpack.c.bf16 %v980, %v978
      %v1286 = vpack.c.bf16 %v984, %v982
      %v1287 = vpack.c.bf16 %v1130, %v1128
      %v1288 = vpack.c.bf16 %v1135, %v1133
      %v1289 = vpack.c.bf16 %v1140, %v1138
      %v1290 = vpack.c.bf16 %v1145, %v1143
      %v1291 = vpack.c.bf16 %v1150, %v1148
      %v1292 = vpack.c.bf16 %v1155, %v1153
      %v1293 = vpack.c.bf16 %v1160, %v1158
      %v1294 = vpack.c.bf16 %v1165, %v1163
      %1295 = vmatpush.bf16.msra.mxu0 %v1294
      %1296 = vmatpush.bf16.msra.mxu0 %v1293
      %1297 = vmatpush.bf16.msra.mxu0 %v1292
      %1298 = vmatpush.bf16.msra.mxu0 %v1291
      %1299 = vmatpush.bf16.msra.mxu0 %v1290
      %1300 = vmatpush.bf16.msra.mxu0 %v1289
      %1301 = vmatpush.bf16.msra.mxu0 %v1288
      %1302 = vmatpush.bf16.msra.mxu0 %v1287
      %1303 = vmatmul.bf16.gmra.mxu0 %v1279
      %v1304 = vpop.f32.mrf.mxu0
      %v1305 = vadd.f32 0.0, %v1304
      %v1306 = vpop.f32.mrf.mxu0
      %v1307 = vadd.f32 0.0, %v1306
      %1308 = vmatmul.bf16.gmra.mxu0 %v1280
      %v1309 = vpop.f32.mrf.mxu0
      %v1310 = vadd.f32 0.0, %v1309
      %v1311 = vpop.f32.mrf.mxu0
      %v1312 = vadd.f32 0.0, %v1311
      %1313 = vmatmul.bf16.gmra.mxu0 %v1281
      %v1314 = vpop.f32.mrf.mxu0
      %v1315 = vadd.f32 0.0, %v1314
      %v1316 = vpop.f32.mrf.mxu0
      %v1317 = vadd.f32 0.0, %v1316
      %1318 = vmatmul.bf16.gmra.mxu0 %v1282
      %v1319 = vpop.f32.mrf.mxu0
      %v1320 = vadd.f32 0.0, %v1319
      %v1321 = vpop.f32.mrf.mxu0
      %v1322 = vadd.f32 0.0, %v1321
      %1323 = vmatmul.bf16.gmra.mxu0 %v1283
      %v1324 = vpop.f32.mrf.mxu0
      %v1325 = vadd.f32 0.0, %v1324
      %v1326 = vpop.f32.mrf.mxu0
      %v1327 = vadd.f32 0.0, %v1326
      %1328 = vmatmul.bf16.gmra.mxu0 %v1284
      %v1329 = vpop.f32.mrf.mxu0
      %v1330 = vadd.f32 0.0, %v1329
      %v1331 = vpop.f32.mrf.mxu0
      %v1332 = vadd.f32 0.0, %v1331
      %1333 = vmatmul.bf16.gmra.mxu0 %v1285
      %v1334 = vpop.f32.mrf.mxu0
      %v1335 = vadd.f32 0.0, %v1334
      %v1336 = vpop.f32.mrf.mxu0
      %v1337 = vadd.f32 0.0, %v1336
      %1338 = vmatmul.bf16.gmra.mxu0 %v1286
      %v1339 = vpop.f32.mrf.mxu0
      %v1340 = vadd.f32 0.0, %v1339
      %v1341 = vpop.f32.mrf.mxu0
      %v1342 = vadd.f32 0.0, %v1341
      %1343 = vdwg.mxu0
      %v1344 = vadd.f32 %v1263, %v1305
      %v1345 = vadd.f32 %v1264, %v1307
      %v1346 = vadd.f32 %v1265, %v1310
      %v1347 = vadd.f32 %v1266, %v1312
      %v1348 = vadd.f32 %v1267, %v1315
      %v1349 = vadd.f32 %v1268, %v1317
      %v1350 = vadd.f32 %v1269, %v1320
      %v1351 = vadd.f32 %v1270, %v1322
      %v1352 = vadd.f32 %v1271, %v1325
      %v1353 = vadd.f32 %v1272, %v1327
      %v1354 = vadd.f32 %v1273, %v1330
      %v1355 = vadd.f32 %v1274, %v1332
      %v1356 = vadd.f32 %v1275, %v1335
      %v1357 = vadd.f32 %v1276, %v1337
      %v1358 = vadd.f32 %v1277, %v1340
      %v1359 = vadd.f32 %v1278, %v1342
      %1360 = vst.msk [vmem:[#allocation5] sm:$0xff] %vm647, %v1344
      %1361 = vst.msk [vmem:[#allocation5 + $0x8] sm:$0xff] %vm647, %v1345
      %1362 = vst.msk [vmem:[#allocation5 + $0x10] sm:$0xff] %vm647, %v1346
      %1363 = vst.msk [vmem:[#allocation5 + $0x18] sm:$0xff] %vm647, %v1347
      %1364 = vst.msk [vmem:[#allocation5 + $0x20] sm:$0xff] %vm647, %v1348
      %1365 = vst.msk [vmem:[#allocation5 + $0x28] sm:$0xff] %vm647, %v1349
      %1366 = vst.msk [vmem:[#allocation5 + $0x30] sm:$0xff] %vm647, %v1350
      %1367 = vst.msk [vmem:[#allocation5 + $0x38] sm:$0xff] %vm647, %v1351
      %1368 = vst.msk [vmem:[#allocation5 + $0x40] sm:$0xff] %vm647, %v1352
      %1369 = vst.msk [vmem:[#allocation5 + $0x48] sm:$0xff] %vm647, %v1353
      %1370 = vst.msk [vmem:[#allocation5 + $0x50] sm:$0xff] %vm647, %v1354
      %1371 = vst.msk [vmem:[#allocation5 + $0x58] sm:$0xff] %vm647, %v1355
      %1372 = vst.msk [vmem:[#allocation5 + $0x60] sm:$0xff] %vm647, %v1356
      %1373 = vst.msk [vmem:[#allocation5 + $0x68] sm:$0xff] %vm647, %v1357
      %1374 = vst.msk [vmem:[#allocation5 + $0x70] sm:$0xff] %vm647, %v1358
      %1375 = vst.msk [vmem:[#allocation5 + $0x78] sm:$0xff] %vm647, %v1359
      %p1376 = scmp.eq.s32.totalorder %s26, 1
      // Predicated region
      $region53: #{tpu_custom_call.1} parent=47 // pred_check
        %p1377 = pneg %p1376
      $region54: #{tpu_custom_call.1} parent=47 // pred_check_branch
        %1379 = sbr.rel (%p1377) target = $region56
      $region55: #{tpu_custom_call.1} parent=47 // pred_region
        %v1380 = vld [vmem:[#allocation4] sm:$0xff]
        %v1381 = vld [vmem:[#allocation4 + $0x8] sm:$0xff]
        %v1382 = vld [vmem:[#allocation4 + $0x10] sm:$0xff]
        %v1383 = vld [vmem:[#allocation4 + $0x18] sm:$0xff]
        %v1384 = vld [vmem:[#allocation4 + $0x20] sm:$0xff]
        %v1385 = vld [vmem:[#allocation4 + $0x28] sm:$0xff]
        %v1386 = vld [vmem:[#allocation4 + $0x30] sm:$0xff]
        %v1387 = vld [vmem:[#allocation4 + $0x38] sm:$0xff]
        %v1388 = vld [vmem:[#allocation4 + $0x40] sm:$0xff]
        %v1389 = vld [vmem:[#allocation4 + $0x48] sm:$0xff]
        %v1390 = vld [vmem:[#allocation4 + $0x50] sm:$0xff]
        %v1391 = vld [vmem:[#allocation4 + $0x58] sm:$0xff]
        %v1392 = vld [vmem:[#allocation4 + $0x60] sm:$0xff]
        %v1393 = vld [vmem:[#allocation4 + $0x68] sm:$0xff]
        %v1394 = vld [vmem:[#allocation4 + $0x70] sm:$0xff]
        %v1395 = vld [vmem:[#allocation4 + $0x78] sm:$0xff]
        %v1396 = vrcp.pop %v1380
        %v1397 = vrcp.pop %v1381
        %v1398 = vrcp.pop %v1382
        %v1399 = vrcp.pop %v1383
        %v1400 = vrcp.pop %v1384
        %v1401 = vrcp.pop %v1385
        %v1402 = vrcp.pop %v1386
        %v1403 = vrcp.pop %v1387
        %v1404 = vrcp.pop %v1388
        %v1405 = vrcp.pop %v1389
        %v1406 = vrcp.pop %v1390
        %v1407 = vrcp.pop %v1391
        %v1408 = vrcp.pop %v1392
        %v1409 = vrcp.pop %v1393
        %v1410 = vrcp.pop %v1394
        %v1411 = vrcp.pop %v1395
        %v1412 = vld [vmem:[#allocation5] sm:$0xff]
        %v1413 = vld [vmem:[#allocation5 + $0x8] sm:$0xff]
        %v1414 = vld [vmem:[#allocation5 + $0x10] sm:$0xff]
        %v1415 = vld [vmem:[#allocation5 + $0x18] sm:$0xff]
        %v1416 = vld [vmem:[#allocation5 + $0x20] sm:$0xff]
        %v1417 = vld [vmem:[#allocation5 + $0x28] sm:$0xff]
        %v1418 = vld [vmem:[#allocation5 + $0x30] sm:$0xff]
        %v1419 = vld [vmem:[#allocation5 + $0x38] sm:$0xff]
        %v1420 = vld [vmem:[#allocation5 + $0x40] sm:$0xff]
        %v1421 = vld [vmem:[#allocation5 + $0x48] sm:$0xff]
        %v1422 = vld [vmem:[#allocation5 + $0x50] sm:$0xff]
        %v1423 = vld [vmem:[#allocation5 + $0x58] sm:$0xff]
        %v1424 = vld [vmem:[#allocation5 + $0x60] sm:$0xff]
        %v1425 = vld [vmem:[#allocation5 + $0x68] sm:$0xff]
        %v1426 = vld [vmem:[#allocation5 + $0x70] sm:$0xff]
        %v1427 = vld [vmem:[#allocation5 + $0x78] sm:$0xff]
        %1429 = vset.pattern.permute.xlu0 0
        %1430 = vperm.xlu0 %1429, %v1396
        %v1431 = vpop.permute.xlu0 %1430
        %1434 = vset.pattern.permute.xlu0 0
        %1435 = vperm.xlu0 %1434, %v1397
        %v1436 = vpop.permute.xlu0 %1435
        %1439 = vset.pattern.permute.xlu0 0
        %1440 = vperm.xlu0 %1439, %v1398
        %v1441 = vpop.permute.xlu0 %1440
        %1444 = vset.pattern.permute.xlu0 0
        %1445 = vperm.xlu0 %1444, %v1399
        %v1446 = vpop.permute.xlu0 %1445
        %1449 = vset.pattern.permute.xlu0 0
        %1450 = vperm.xlu0 %1449, %v1400
        %v1451 = vpop.permute.xlu0 %1450
        %1454 = vset.pattern.permute.xlu0 0
        %1455 = vperm.xlu0 %1454, %v1401
        %v1456 = vpop.permute.xlu0 %1455
        %1459 = vset.pattern.permute.xlu0 0
        %1460 = vperm.xlu0 %1459, %v1402
        %v1461 = vpop.permute.xlu0 %1460
        %1464 = vset.pattern.permute.xlu0 0
        %1465 = vperm.xlu0 %1464, %v1403
        %v1466 = vpop.permute.xlu0 %1465
        %1469 = vset.pattern.permute.xlu0 0
        %1470 = vperm.xlu0 %1469, %v1404
        %v1471 = vpop.permute.xlu0 %1470
        %1474 = vset.pattern.permute.xlu0 0
        %1475 = vperm.xlu0 %1474, %v1405
        %v1476 = vpop.permute.xlu0 %1475
        %1479 = vset.pattern.permute.xlu0 0
        %1480 = vperm.xlu0 %1479, %v1406
        %v1481 = vpop.permute.xlu0 %1480
        %1484 = vset.pattern.permute.xlu0 0
        %1485 = vperm.xlu0 %1484, %v1407
        %v1486 = vpop.permute.xlu0 %1485
        %1489 = vset.pattern.permute.xlu0 0
        %1490 = vperm.xlu0 %1489, %v1408
        %v1491 = vpop.permute.xlu0 %1490
        %1494 = vset.pattern.permute.xlu0 0
        %1495 = vperm.xlu0 %1494, %v1409
        %v1496 = vpop.permute.xlu0 %1495
        %1499 = vset.pattern.permute.xlu0 0
        %1500 = vperm.xlu0 %1499, %v1410
        %v1501 = vpop.permute.xlu0 %1500
        %1504 = vset.pattern.permute.xlu0 0
        %1505 = vperm.xlu0 %1504, %v1411
        %v1506 = vpop.permute.xlu0 %1505
        %v1508 = vmul.f32 %v1412, %v1431
        %v1509 = vmul.f32 %v1413, %v1436
        %v1510 = vmul.f32 %v1414, %v1441
        %v1511 = vmul.f32 %v1415, %v1446
        %v1512 = vmul.f32 %v1416, %v1451
        %v1513 = vmul.f32 %v1417, %v1456
        %v1514 = vmul.f32 %v1418, %v1461
        %v1515 = vmul.f32 %v1419, %v1466
        %v1516 = vmul.f32 %v1420, %v1471
        %v1517 = vmul.f32 %v1421, %v1476
        %v1518 = vmul.f32 %v1422, %v1481
        %v1519 = vmul.f32 %v1423, %v1486
        %v1520 = vmul.f32 %v1424, %v1491
        %v1521 = vmul.f32 %v1425, %v1496
        %v1522 = vmul.f32 %v1426, %v1501
        %v1523 = vmul.f32 %v1427, %v1506
        %s1524 = sld [smem:[#allocation6]]
        %v1525 = vstv %s1524
        %v1526 = vmul.f32 %v1525, %v1508
        %v1527 = vmul.f32 %v1525, %v1509
        %v1528 = vmul.f32 %v1525, %v1510
        %v1529 = vmul.f32 %v1525, %v1511
        %v1530 = vmul.f32 %v1525, %v1512
        %v1531 = vmul.f32 %v1525, %v1513
        %v1532 = vmul.f32 %v1525, %v1514
        %v1533 = vmul.f32 %v1525, %v1515
        %v1534 = vmul.f32 %v1525, %v1516
        %v1535 = vmul.f32 %v1525, %v1517
        %v1536 = vmul.f32 %v1525, %v1518
        %v1537 = vmul.f32 %v1525, %v1519
        %v1538 = vmul.f32 %v1525, %v1520
        %v1539 = vmul.f32 %v1525, %v1521
        %v1540 = vmul.f32 %v1525, %v1522
        %v1541 = vmul.f32 %v1525, %v1523
        %v1542 = vld [vmem:[%s340] sm:$0xff]
        %v1543 = vld [vmem:[%s340 + $0x8] sm:$0xff]
        %v1544 = vld [vmem:[%s340 + $0x10] sm:$0xff]
        %v1545 = vld [vmem:[%s340 + $0x18] sm:$0xff]
        %v1546 = vld [vmem:[%s340 + $0x20] sm:$0xff]
        %v1547 = vld [vmem:[%s340 + $0x28] sm:$0xff]
        %v1548 = vld [vmem:[%s340 + $0x30] sm:$0xff]
        %v1549 = vld [vmem:[%s340 + $0x38] sm:$0xff]
        %v1550 = vld [vmem:[%s340 + $0x40] sm:$0xff]
        %v1551 = vld [vmem:[%s340 + $0x48] sm:$0xff]
        %v1552 = vld [vmem:[%s340 + $0x50] sm:$0xff]
        %v1553 = vld [vmem:[%s340 + $0x58] sm:$0xff]
        %v1554 = vld [vmem:[%s340 + $0x60] sm:$0xff]
        %v1555 = vld [vmem:[%s340 + $0x68] sm:$0xff]
        %v1556 = vld [vmem:[%s340 + $0x70] sm:$0xff]
        %v1557 = vld [vmem:[%s340 + $0x78] sm:$0xff]
        %v1558 = vadd.f32 %v1526, %v1542
        %v1559 = vadd.f32 %v1527, %v1543
        %v1560 = vadd.f32 %v1528, %v1544
        %v1561 = vadd.f32 %v1529, %v1545
        %v1562 = vadd.f32 %v1530, %v1546
        %v1563 = vadd.f32 %v1531, %v1547
        %v1564 = vadd.f32 %v1532, %v1548
        %v1565 = vadd.f32 %v1533, %v1549
        %v1566 = vadd.f32 %v1534, %v1550
        %v1567 = vadd.f32 %v1535, %v1551
        %v1568 = vadd.f32 %v1536, %v1552
        %v1569 = vadd.f32 %v1537, %v1553
        %v1570 = vadd.f32 %v1538, %v1554
        %v1571 = vadd.f32 %v1539, %v1555
        %v1572 = vadd.f32 %v1540, %v1556
        %v1573 = vadd.f32 %v1541, %v1557
        %1574 = vst.msk [vmem:[%s360] sm:$0xff] %vm647, %v1558
        %1575 = vst.msk [vmem:[%s360 + $0x8] sm:$0xff] %vm647, %v1559
        %1576 = vst.msk [vmem:[%s360 + $0x10] sm:$0xff] %vm647, %v1560
        %1577 = vst.msk [vmem:[%s360 + $0x18] sm:$0xff] %vm647, %v1561
        %1578 = vst.msk [vmem:[%s360 + $0x20] sm:$0xff] %vm647, %v1562
        %1579 = vst.msk [vmem:[%s360 + $0x28] sm:$0xff] %vm647, %v1563
        %1580 = vst.msk [vmem:[%s360 + $0x30] sm:$0xff] %vm647, %v1564
        %1581 = vst.msk [vmem:[%s360 + $0x38] sm:$0xff] %vm647, %v1565
        %1582 = vst.msk [vmem:[%s360 + $0x40] sm:$0xff] %vm647, %v1566
        %1583 = vst.msk [vmem:[%s360 + $0x48] sm:$0xff] %vm647, %v1567
        %1584 = vst.msk [vmem:[%s360 + $0x50] sm:$0xff] %vm647, %v1568
        %1585 = vst.msk [vmem:[%s360 + $0x58] sm:$0xff] %vm647, %v1569
        %1586 = vst.msk [vmem:[%s360 + $0x60] sm:$0xff] %vm647, %v1570
        %1587 = vst.msk [vmem:[%s360 + $0x68] sm:$0xff] %vm647, %v1571
        %1588 = vst.msk [vmem:[%s360 + $0x70] sm:$0xff] %vm647, %v1572
        %1589 = vst.msk [vmem:[%s360 + $0x78] sm:$0xff] %vm647, %v1573
      $region56: #{tpu_custom_call.1} parent=47 // pred_fallthru
        _
      %s1590 = smul.u32 16, %s25
      %p1591 = scmp.lt.s32.totalorder %s24, 1
      %s1592 = scalar_select %p1591, %s24, 1
      %p1593 = scmp.lt.s32.totalorder %s1590, 31
      %s1594 = scalar_select %p1593, %s1590, 31
      %s1595 = smul.addr %s1592, 32
      %s1596 = sadd.s32 %s1594, %s1595
      %s1597 = smul.addr %s1596, 8
      %s1598 = scalar_lea.vmem %s7, %s1597
      // Predicated region
      $region57: #{tpu_custom_call.1} parent=47 // pred_check
        %p1599 = pneg %p219
      $region58: #{tpu_custom_call.1} parent=47 // pred_check_branch
        %1601 = sbr.rel (%p1599) target = $region60
      $region59: #{tpu_custom_call.1} parent=47 // pred_region
        %s1602 = smul.u32 16, %s25
      $region60: #{tpu_custom_call.1} parent=47 // pred_fallthru
        _
    $region48: #{tpu_custom_call.1} parent=5 // pred_fallthru
      _
    %p1603 = scmp.le.s32.totalorder 2, %s14
    // Predicated region
    $region61: #{tpu_custom_call.1} parent=5 // pred_check
      %p1604 = pneg %p1603
    $region62: #{tpu_custom_call.1} parent=5 // pred_check_branch
      %1606 = sbr.rel (%p1604) target = $region64
    $region63: #{tpu_custom_call.1} parent=5 // pred_region
      %s1607 = ssub.s32 %s14, 2
      // Predicated region
      $region65: #{tpu_custom_call.1} parent=63 // pred_check
        %p1608 = pneg %p225
      $region66: #{tpu_custom_call.1} parent=63 // pred_check_branch
        %1610 = sbr.rel (%p1608) target = $region68
      $region67: #{tpu_custom_call.1} parent=63 // pred_region
        %s1611 = smul.u32 16, %s28
        %p1612 = scmp.lt.s32.totalorder %s27, 1
        %s1613 = scalar_select %p1612, %s27, 1
        %p1614 = scmp.lt.s32.totalorder %s1611, 31
        %s1615 = scalar_select %p1614, %s1611, 31
        %s1616 = smul.addr %s1613, 32
        %s1617 = sadd.s32 %s1615, %s1616
        %s1618 = smul.addr %s1617, 8
        %s1619 = scalar_lea.vmem %s7, %s1618
      $region68: #{tpu_custom_call.1} parent=63 // pred_fallthru
        _
    $region64: #{tpu_custom_call.1} parent=5 // pred_fallthru
      _
  $region6: #{tpu_custom_call.1} parent=0 // loop_footer
    %s18 = sadd.s32 1, %s14
  $region7: #{tpu_custom_call.1} parent=0 // loop_footer_branch
    %13 = sbr.rel target = $region3
  $region8: #{tpu_custom_call.1} parent=0 // loop_exit
    _

</llo_original>
